<compile_context>
chip_gen: v7x
topology: tpu7x:2x2x1
jax: 0.10.0
libtpu: 0.0.40
codegen_flags: <defaults>
</compile_context>

<pallas_src>
import jax
import jax.numpy as jnp
from jax.experimental import pallas as pl
from jax.experimental.pallas import tpu as pltpu


def _round_up(x, m):
    return ((x + m - 1) // m) * m


def _choose_tm(M):
    """Row-tile size for the matmul M axis."""
    if M <= 512:
        return M                                  # single full-dim tile (always legal)
    if M <= 2048:
        return _round_up((M + 1) // 2, 8)         # >=2 tiles -> both v7x TCs busy
    return 1024                                   # big layers: amortize per-step overhead


# ----------------------------------------------------------------------------
# Pallas kernel: one M-tile of (im2col-patches @ weight) + bias + ReLU
# ----------------------------------------------------------------------------
def _conv_mm_relu_kernel(p_ref, w_ref, b_ref, o_ref):
    # p_ref: [TM, K] bf16   w_ref: [K, Cout] bf16   b_ref: [1, Cout] f32
    # o_ref: [TM, Cout] bf16
    acc = jnp.dot(p_ref[...], w_ref[...], preferred_element_type=jnp.float32)
    acc = acc + b_ref[...]
    o_ref[...] = jnp.maximum(acc, 0.0).astype(o_ref.dtype)


def _conv_mm_relu(patches, weight2d, bias2d):
    """patches: [M, K] bf16, weight2d: [K, Cout] bf16, bias2d: [1, Cout] f32 -> [M, Cout] bf16."""
    M, K = patches.shape
    Cout = weight2d.shape[1]
    TM = _choose_tm(M)

    return pl.pallas_call(
        _conv_mm_relu_kernel,
        out_shape=jax.ShapeDtypeStruct((M, Cout), jnp.bfloat16),
        grid=(pl.cdiv(M, TM),),
        in_specs=[
            pl.BlockSpec((TM, K), lambda i: (i, 0)),     # patches: streamed over M
            pl.BlockSpec((K, Cout), lambda i: (0, 0)),   # weight:  resident in VMEM
            pl.BlockSpec((1, Cout), lambda i: (0, 0)),   # bias:    resident in VMEM
        ],
        out_specs=pl.BlockSpec((TM, Cout), lambda i: (i, 0)),
        compiler_params=pltpu.CompilerParams(
            dimension_semantics=("parallel",),  # megacore-shardable (v7x: 2 TCs)
            # Allow XLA to fuse the im2col producer into the patches operand so
            # the [M, 9*Cin] tensor is computed per-block instead of round-
            # tripping through HBM.
            allow_input_fusion=[True, False, False],
        ),
    )(patches, weight2d, bias2d)


# ----------------------------------------------------------------------------
# Conv block: 3x3, stride 2, pad 1, ReLU  (NHWC, bf16 in / bf16 out)
# ----------------------------------------------------------------------------
def conv3x3_s2_relu(x_nhwc, weight_hwio, bias):
    """x_nhwc: [N,H,W,Cin] bf16, weight_hwio: [3,3,Cin,Cout] f32, bias: [Cout] f32."""
    N, H, W, Cin = x_nhwc.shape
    Cout = weight_hwio.shape[-1]
    Ho = (H + 2 - 3) // 2 + 1
    Wo = (W + 2 - 3) // 2 + 1

    # im2col: 9 stride-2 taps of the zero-padded bf16 input.  With
    # allow_input_fusion this chain can be fused into the kernel operand.
    # TODO(synk): do the 9-tap gather fully in-kernel (strided DMA from the
    # padded NHWC input via memory_space=pl.ANY) to also cover configurations
    # where the input-fusion hint is not honoured.
    xp = jnp.pad(x_nhwc, ((0, 0), (1, 1), (1, 1), (0, 0)))
    taps = []
    for dy in range(3):
        for dx in range(3):
            taps.append(
                jax.lax.slice(
                    xp,
                    (0, dy, dx, 0),
                    (N, dy + 2 * (Ho - 1) + 1, dx + 2 * (Wo - 1) + 1, Cin),
                    (1, 2, 2, 1),
                )  # [N, Ho, Wo, Cin]
            )
    patches = jnp.concatenate(taps, axis=-1).reshape(N * Ho * Wo, 9 * Cin)  # [M, K] bf16

    w2d = weight_hwio.astype(jnp.bfloat16).reshape(9 * Cin, Cout)  # (dy,dx,cin) ordering
    b2d = bias.astype(jnp.float32).reshape(1, Cout)

    out = _conv_mm_relu(patches, w2d, b2d)                          # [M, Cout] bf16
    return out.reshape(N, Ho, Wo, Cout)


# ----------------------------------------------------------------------------
# EncoderBackbone: 5 blocks, return feats of blocks 1..4
# ----------------------------------------------------------------------------
def init_backbone_params(key, in_ch=3, widths=(8, 16, 32, 64, 128)):
    # TODO(synk): PyTorch Conv2d default init is kaiming-uniform; He-normal here
    # only matters if reproducing an untrained torch model bit-for-bit.
    params = []
    cin = in_ch
    for cout in widths:
        kw, kb, key = jax.random.split(key, 3)
        fan_in = 9 * cin
        std = (2.0 / fan_in) ** 0.5
        w = std * jax.random.normal(kw, (3, 3, cin, cout), dtype=jnp.float32)
        b = 0.01 * jax.random.normal(kb, (cout,), dtype=jnp.float32)
        params.append((w, b))
        cin = cout
    return params


@jax.jit
def encoder_backbone_forward(x_nchw, params):
    """Forward pass. Input NCHW (PyTorch convention); returns list of 4
    feature maps (outputs of blocks 1..4), each in NCHW f32."""
    # NCHW -> NHWC once, cast to bf16 once (upstream of all im2col gathers).
    x = jnp.transpose(x_nchw, (0, 2, 3, 1)).astype(jnp.bfloat16)
    feats_nhwc = []
    # TODO(synk): fuse the tiny late blocks (2-4) into a single pallas_call with
    # all weights resident in VMEM to remove per-call launch overhead.
    for i, (w, b) in enumerate(params):
        x = conv3x3_s2_relu(x, w, b)
        if i > 0:  # do not store the output of the first block
            feats_nhwc.append(x)
    # f32 + NCHW only at the API boundary (cast fuses into the transpose copy).
    return [jnp.transpose(f, (0, 3, 1, 2)).astype(jnp.float32) for f in feats_nhwc]


if __name__ == "__main__":
    key = jax.random.PRNGKey(0)
    kx, kp = jax.random.split(key)

    # Small deterministic input consistent with an image encoder: N=2, C=3, 16x16
    x = jax.random.normal(kx, (2, 3, 16, 16), dtype=jnp.float32)
    params = init_backbone_params(kp)

    feats = encoder_backbone_forward(x, params)
    feats = jax.block_until_ready(feats)

    # Sanity: 4 feature maps (blocks 1..4), channels doubling, spatial halving.
    expected = [(2, 16, 4, 4), (2, 32, 2, 2), (2, 64, 1, 1), (2, 128, 1, 1)]
    assert len(feats) == 4, f"expected 4 feature maps, got {len(feats)}"
    for f, es in zip(feats, expected):
        assert f.shape == es, f"shape mismatch: {f.shape} vs {es}"
        assert f.dtype == jnp.float32, f"dtype mismatch: {f.dtype}"
        assert bool(jnp.all(f >= 0.0)), "ReLU output must be non-negative"

    print("KERNEL_OK")
</pallas_src>

<mosaic_0001>
module attributes {stable_mosaic.version = 11 : i64} {
  func.func @_conv_mm_relu_kernel(%arg0: i32, %arg1: memref<128x27xbf16, #tpu.memory_space<vmem>>, %arg2: memref<27x8xbf16, #tpu.memory_space<vmem>>, %arg3: memref<1x8xf32, #tpu.memory_space<vmem>>, %arg4: memref<128x8xbf16, #tpu.memory_space<vmem>>) attributes {dimension_semantics = [#tpu.dimension_semantics<parallel>], iteration_bounds = array<i64: 1>, scalar_prefetch = 0 : i64, scratch_operands = 0 : i64, tpu.core_type = #tpu.core_type<tc>, window_params = [{transform_indices = @transform_0, window_bounds = array<i64: 128, 27>}, {pipeline_mode = #tpu.pipeline_mode<synchronous>, transform_indices = @transform_1, window_bounds = array<i64: 27, 8>}, {pipeline_mode = #tpu.pipeline_mode<synchronous>, transform_indices = @transform_2, window_bounds = array<i64: 1, 8>}, {transform_indices = @transform_3, window_bounds = array<i64: 128, 8>}]} {
    %c0 = arith.constant 0 : index
    %c0_0 = arith.constant 0 : index
    %0 = vector.load %arg1[%c0, %c0_0] : memref<128x27xbf16, #tpu.memory_space<vmem>>, vector<128x27xbf16>
    %c0_1 = arith.constant 0 : index
    %c0_2 = arith.constant 0 : index
    %1 = vector.load %arg2[%c0_1, %c0_2] : memref<27x8xbf16, #tpu.memory_space<vmem>>, vector<27x8xbf16>
    %cst = arith.constant dense<0.000000e+00> : vector<128x8xf32>
    %2 = tpu.matmul %0, %1, %cst {dimension_numbers = #tpu.dot_dimension_numbers<[1], [0], [0], [1], [0, 0, 1, 1], [], []>} : vector<128x27xbf16>, vector<27x8xbf16>, vector<128x8xf32> -> vector<128x8xf32>
    %c0_3 = arith.constant 0 : index
    %c0_4 = arith.constant 0 : index
    %3 = vector.load %arg3[%c0_3, %c0_4] : memref<1x8xf32, #tpu.memory_space<vmem>>, vector<1x8xf32>
    %4 = vector.broadcast %3 : vector<1x8xf32> to vector<128x8xf32>
    %5 = arith.addf %2, %4 : vector<128x8xf32>
    %cst_5 = arith.constant 0.000000e+00 : f32
    %6 = vector.broadcast %cst_5 : f32 to vector<128x8xf32>
    %7 = arith.maximumf %5, %6 : vector<128x8xf32>
    %8 = arith.truncf %7 : vector<128x8xf32> to vector<128x8xbf16>
    %c0_6 = arith.constant 0 : index
    %c0_7 = arith.constant 0 : index
    %9 = vector.load %arg4[%c0_6, %c0_7] : memref<128x8xbf16, #tpu.memory_space<vmem>>, vector<128x8xbf16>
    tpu.vector_store %arg4[%c0_6, %c0_7], %8 {strides = array<i32>} : memref<128x8xbf16, #tpu.memory_space<vmem>>, vector<128x8xbf16>,
    return
  }
  func.func @transform_0(%arg0: i32) -> (i32, i32) {
    %c0_i32 = arith.constant 0 : i32
    %c0_i32_0 = arith.constant 0 : i32
    return %arg0, %c0_i32 : i32, i32
  }
  func.func @transform_1(%arg0: i32) -> (i32, i32) {
    %c0_i32 = arith.constant 0 : i32
    %c0_i32_0 = arith.constant 0 : i32
    %c0_i32_1 = arith.constant 0 : i32
    return %c0_i32, %c0_i32_0 : i32, i32
  }
  func.func @transform_2(%arg0: i32) -> (i32, i32) {
    %c0_i32 = arith.constant 0 : i32
    %c0_i32_0 = arith.constant 0 : i32
    %c0_i32_1 = arith.constant 0 : i32
    return %c0_i32, %c0_i32_0 : i32, i32
  }
  func.func @transform_3(%arg0: i32) -> (i32, i32) {
    %c0_i32 = arith.constant 0 : i32
    %c0_i32_0 = arith.constant 0 : i32
    return %arg0, %c0_i32 : i32, i32
  }
}

module attributes {stable_mosaic.version = 11 : i64} {
  func.func @_conv_mm_relu_kernel(%arg0: i32, %arg1: memref<32x72xbf16, #tpu.memory_space<vmem>>, %arg2: memref<72x16xbf16, #tpu.memory_space<vmem>>, %arg3: memref<1x16xf32, #tpu.memory_space<vmem>>, %arg4: memref<32x16xbf16, #tpu.memory_space<vmem>>) attributes {dimension_semantics = [#tpu.dimension_semantics<parallel>], iteration_bounds = array<i64: 1>, scalar_prefetch = 0 : i64, scratch_operands = 0 : i64, tpu.core_type = #tpu.core_type<tc>, window_params = [{transform_indices = @transform_0, window_bounds = array<i64: 32, 72>}, {pipeline_mode = #tpu.pipeline_mode<synchronous>, transform_indices = @transform_1, window_bounds = array<i64: 72, 16>}, {pipeline_mode = #tpu.pipeline_mode<synchronous>, transform_indices = @transform_2, window_bounds = array<i64: 1, 16>}, {transform_indices = @transform_3, window_bounds = array<i64: 32, 16>}]} {
    %c0 = arith.constant 0 : index
    %c0_0 = arith.constant 0 : index
    %0 = vector.load %arg1[%c0, %c0_0] : memref<32x72xbf16, #tpu.memory_space<vmem>>, vector<32x72xbf16>
    %c0_1 = arith.constant 0 : index
    %c0_2 = arith.constant 0 : index
    %1 = vector.load %arg2[%c0_1, %c0_2] : memref<72x16xbf16, #tpu.memory_space<vmem>>, vector<72x16xbf16>
    %cst = arith.constant dense<0.000000e+00> : vector<32x16xf32>
    %2 = tpu.matmul %0, %1, %cst {dimension_numbers = #tpu.dot_dimension_numbers<[1], [0], [0], [1], [0, 0, 1, 1], [], []>} : vector<32x72xbf16>, vector<72x16xbf16>, vector<32x16xf32> -> vector<32x16xf32>
    %c0_3 = arith.constant 0 : index
    %c0_4 = arith.constant 0 : index
    %3 = vector.load %arg3[%c0_3, %c0_4] : memref<1x16xf32, #tpu.memory_space<vmem>>, vector<1x16xf32>
    %4 = vector.broadcast %3 : vector<1x16xf32> to vector<32x16xf32>
    %5 = arith.addf %2, %4 : vector<32x16xf32>
    %cst_5 = arith.constant 0.000000e+00 : f32
    %6 = vector.broadcast %cst_5 : f32 to vector<32x16xf32>
    %7 = arith.maximumf %5, %6 : vector<32x16xf32>
    %8 = arith.truncf %7 : vector<32x16xf32> to vector<32x16xbf16>
    %c0_6 = arith.constant 0 : index
    %c0_7 = arith.constant 0 : index
    %9 = vector.load %arg4[%c0_6, %c0_7] : memref<32x16xbf16, #tpu.memory_space<vmem>>, vector<32x16xbf16>
    tpu.vector_store %arg4[%c0_6, %c0_7], %8 {strides = array<i32>} : memref<32x16xbf16, #tpu.memory_space<vmem>>, vector<32x16xbf16>,
    return
  }
  func.func @transform_0(%arg0: i32) -> (i32, i32) {
    %c0_i32 = arith.constant 0 : i32
    %c0_i32_0 = arith.constant 0 : i32
    return %arg0, %c0_i32 : i32, i32
  }
  func.func @transform_1(%arg0: i32) -> (i32, i32) {
    %c0_i32 = arith.constant 0 : i32
    %c0_i32_0 = arith.constant 0 : i32
    %c0_i32_1 = arith.constant 0 : i32
    return %c0_i32, %c0_i32_0 : i32, i32
  }
  func.func @transform_2(%arg0: i32) -> (i32, i32) {
    %c0_i32 = arith.constant 0 : i32
    %c0_i32_0 = arith.constant 0 : i32
    %c0_i32_1 = arith.constant 0 : i32
    return %c0_i32, %c0_i32_0 : i32, i32
  }
  func.func @transform_3(%arg0: i32) -> (i32, i32) {
    %c0_i32 = arith.constant 0 : i32
    %c0_i32_0 = arith.constant 0 : i32
    return %arg0, %c0_i32 : i32, i32
  }
}

module attributes {stable_mosaic.version = 11 : i64} {
  func.func @_conv_mm_relu_kernel(%arg0: i32, %arg1: memref<8x144xbf16, #tpu.memory_space<vmem>>, %arg2: memref<144x32xbf16, #tpu.memory_space<vmem>>, %arg3: memref<1x32xf32, #tpu.memory_space<vmem>>, %arg4: memref<8x32xbf16, #tpu.memory_space<vmem>>) attributes {dimension_semantics = [#tpu.dimension_semantics<parallel>], iteration_bounds = array<i64: 1>, scalar_prefetch = 0 : i64, scratch_operands = 0 : i64, tpu.core_type = #tpu.core_type<tc>, window_params = [{transform_indices = @transform_0, window_bounds = array<i64: 8, 144>}, {pipeline_mode = #tpu.pipeline_mode<synchronous>, transform_indices = @transform_1, window_bounds = array<i64: 144, 32>}, {pipeline_mode = #tpu.pipeline_mode<synchronous>, transform_indices = @transform_2, window_bounds = array<i64: 1, 32>}, {transform_indices = @transform_3, window_bounds = array<i64: 8, 32>}]} {
    %c0 = arith.constant 0 : index
    %c0_0 = arith.constant 0 : index
    %0 = vector.load %arg1[%c0, %c0_0] : memref<8x144xbf16, #tpu.memory_space<vmem>>, vector<8x144xbf16>
    %c0_1 = arith.constant 0 : index
    %c0_2 = arith.constant 0 : index
    %1 = vector.load %arg2[%c0_1, %c0_2] : memref<144x32xbf16, #tpu.memory_space<vmem>>, vector<144x32xbf16>
    %cst = arith.constant dense<0.000000e+00> : vector<8x32xf32>
    %2 = tpu.matmul %0, %1, %cst {dimension_numbers = #tpu.dot_dimension_numbers<[1], [0], [0], [1], [0, 0, 1, 1], [], []>} : vector<8x144xbf16>, vector<144x32xbf16>, vector<8x32xf32> -> vector<8x32xf32>
    %c0_3 = arith.constant 0 : index
    %c0_4 = arith.constant 0 : index
    %3 = vector.load %arg3[%c0_3, %c0_4] : memref<1x32xf32, #tpu.memory_space<vmem>>, vector<1x32xf32>
    %4 = vector.broadcast %3 : vector<1x32xf32> to vector<8x32xf32>
    %5 = arith.addf %2, %4 : vector<8x32xf32>
    %cst_5 = arith.constant 0.000000e+00 : f32
    %6 = vector.broadcast %cst_5 : f32 to vector<8x32xf32>
    %7 = arith.maximumf %5, %6 : vector<8x32xf32>
    %8 = arith.truncf %7 : vector<8x32xf32> to vector<8x32xbf16>
    %c0_6 = arith.constant 0 : index
    %c0_7 = arith.constant 0 : index
    %9 = vector.load %arg4[%c0_6, %c0_7] : memref<8x32xbf16, #tpu.memory_space<vmem>>, vector<8x32xbf16>
    tpu.vector_store %arg4[%c0_6, %c0_7], %8 {strides = array<i32>} : memref<8x32xbf16, #tpu.memory_space<vmem>>, vector<8x32xbf16>,
    return
  }
  func.func @transform_0(%arg0: i32) -> (i32, i32) {
    %c0_i32 = arith.constant 0 : i32
    %c0_i32_0 = arith.constant 0 : i32
    return %arg0, %c0_i32 : i32, i32
  }
  func.func @transform_1(%arg0: i32) -> (i32, i32) {
    %c0_i32 = arith.constant 0 : i32
    %c0_i32_0 = arith.constant 0 : i32
    %c0_i32_1 = arith.constant 0 : i32
    return %c0_i32, %c0_i32_0 : i32, i32
  }
  func.func @transform_2(%arg0: i32) -> (i32, i32) {
    %c0_i32 = arith.constant 0 : i32
    %c0_i32_0 = arith.constant 0 : i32
    %c0_i32_1 = arith.constant 0 : i32
    return %c0_i32, %c0_i32_0 : i32, i32
  }
  func.func @transform_3(%arg0: i32) -> (i32, i32) {
    %c0_i32 = arith.constant 0 : i32
    %c0_i32_0 = arith.constant 0 : i32
    return %arg0, %c0_i32 : i32, i32
  }
}

module attributes {stable_mosaic.version = 11 : i64} {
  func.func @_conv_mm_relu_kernel(%arg0: i32, %arg1: memref<2x288xbf16, #tpu.memory_space<vmem>>, %arg2: memref<288x64xbf16, #tpu.memory_space<vmem>>, %arg3: memref<1x64xf32, #tpu.memory_space<vmem>>, %arg4: memref<2x64xbf16, #tpu.memory_space<vmem>>) attributes {dimension_semantics = [#tpu.dimension_semantics<parallel>], iteration_bounds = array<i64: 1>, scalar_prefetch = 0 : i64, scratch_operands = 0 : i64, tpu.core_type = #tpu.core_type<tc>, window_params = [{transform_indices = @transform_0, window_bounds = array<i64: 2, 288>}, {pipeline_mode = #tpu.pipeline_mode<synchronous>, transform_indices = @transform_1, window_bounds = array<i64: 288, 64>}, {pipeline_mode = #tpu.pipeline_mode<synchronous>, transform_indices = @transform_2, window_bounds = array<i64: 1, 64>}, {transform_indices = @transform_3, window_bounds = array<i64: 2, 64>}]} {
    %c0 = arith.constant 0 : index
    %c0_0 = arith.constant 0 : index
    %0 = vector.load %arg1[%c0, %c0_0] : memref<2x288xbf16, #tpu.memory_space<vmem>>, vector<2x288xbf16>
    %c0_1 = arith.constant 0 : index
    %c0_2 = arith.constant 0 : index
    %1 = vector.load %arg2[%c0_1, %c0_2] : memref<288x64xbf16, #tpu.memory_space<vmem>>, vector<288x64xbf16>
    %cst = arith.constant dense<0.000000e+00> : vector<2x64xf32>
    %2 = tpu.matmul %0, %1, %cst {dimension_numbers = #tpu.dot_dimension_numbers<[1], [0], [0], [1], [0, 0, 1, 1], [], []>} : vector<2x288xbf16>, vector<288x64xbf16>, vector<2x64xf32> -> vector<2x64xf32>
    %c0_3 = arith.constant 0 : index
    %c0_4 = arith.constant 0 : index
    %3 = vector.load %arg3[%c0_3, %c0_4] : memref<1x64xf32, #tpu.memory_space<vmem>>, vector<1x64xf32>
    %4 = vector.broadcast %3 : vector<1x64xf32> to vector<2x64xf32>
    %5 = arith.addf %2, %4 : vector<2x64xf32>
    %cst_5 = arith.constant 0.000000e+00 : f32
    %6 = vector.broadcast %cst_5 : f32 to vector<2x64xf32>
    %7 = arith.maximumf %5, %6 : vector<2x64xf32>
    %8 = arith.truncf %7 : vector<2x64xf32> to vector<2x64xbf16>
    %c0_6 = arith.constant 0 : index
    %c0_7 = arith.constant 0 : index
    %9 = vector.load %arg4[%c0_6, %c0_7] : memref<2x64xbf16, #tpu.memory_space<vmem>>, vector<2x64xbf16>
    tpu.vector_store %arg4[%c0_6, %c0_7], %8 {strides = array<i32>} : memref<2x64xbf16, #tpu.memory_space<vmem>>, vector<2x64xbf16>,
    return
  }
  func.func @transform_0(%arg0: i32) -> (i32, i32) {
    %c0_i32 = arith.constant 0 : i32
    %c0_i32_0 = arith.constant 0 : i32
    return %arg0, %c0_i32 : i32, i32
  }
  func.func @transform_1(%arg0: i32) -> (i32, i32) {
    %c0_i32 = arith.constant 0 : i32
    %c0_i32_0 = arith.constant 0 : i32
    %c0_i32_1 = arith.constant 0 : i32
    return %c0_i32, %c0_i32_0 : i32, i32
  }
  func.func @transform_2(%arg0: i32) -> (i32, i32) {
    %c0_i32 = arith.constant 0 : i32
    %c0_i32_0 = arith.constant 0 : i32
    %c0_i32_1 = arith.constant 0 : i32
    return %c0_i32, %c0_i32_0 : i32, i32
  }
  func.func @transform_3(%arg0: i32) -> (i32, i32) {
    %c0_i32 = arith.constant 0 : i32
    %c0_i32_0 = arith.constant 0 : i32
    return %arg0, %c0_i32 : i32, i32
  }
}

module attributes {stable_mosaic.version = 11 : i64} {
  func.func @_conv_mm_relu_kernel(%arg0: i32, %arg1: memref<2x576xbf16, #tpu.memory_space<vmem>>, %arg2: memref<576x128xbf16, #tpu.memory_space<vmem>>, %arg3: memref<1x128xf32, #tpu.memory_space<vmem>>, %arg4: memref<2x128xbf16, #tpu.memory_space<vmem>>) attributes {dimension_semantics = [#tpu.dimension_semantics<parallel>], iteration_bounds = array<i64: 1>, scalar_prefetch = 0 : i64, scratch_operands = 0 : i64, tpu.core_type = #tpu.core_type<tc>, window_params = [{transform_indices = @transform_0, window_bounds = array<i64: 2, 576>}, {pipeline_mode = #tpu.pipeline_mode<synchronous>, transform_indices = @transform_1, window_bounds = array<i64: 576, 128>}, {pipeline_mode = #tpu.pipeline_mode<synchronous>, transform_indices = @transform_2, window_bounds = array<i64: 1, 128>}, {transform_indices = @transform_3, window_bounds = array<i64: 2, 128>}]} {
    %c0 = arith.constant 0 : index
    %c0_0 = arith.constant 0 : index
    %0 = vector.load %arg1[%c0, %c0_0] : memref<2x576xbf16, #tpu.memory_space<vmem>>, vector<2x576xbf16>
    %c0_1 = arith.constant 0 : index
    %c0_2 = arith.constant 0 : index
    %1 = vector.load %arg2[%c0_1, %c0_2] : memref<576x128xbf16, #tpu.memory_space<vmem>>, vector<576x128xbf16>
    %cst = arith.constant dense<0.000000e+00> : vector<2x128xf32>
    %2 = tpu.matmul %0, %1, %cst {dimension_numbers = #tpu.dot_dimension_numbers<[1], [0], [0], [1], [0, 0, 1, 1], [], []>} : vector<2x576xbf16>, vector<576x128xbf16>, vector<2x128xf32> -> vector<2x128xf32>
    %c0_3 = arith.constant 0 : index
    %c0_4 = arith.constant 0 : index
    %3 = vector.load %arg3[%c0_3, %c0_4] : memref<1x128xf32, #tpu.memory_space<vmem>>, vector<1x128xf32>
    %4 = vector.broadcast %3 : vector<1x128xf32> to vector<2x128xf32>
    %5 = arith.addf %2, %4 : vector<2x128xf32>
    %cst_5 = arith.constant 0.000000e+00 : f32
    %6 = vector.broadcast %cst_5 : f32 to vector<2x128xf32>
    %7 = arith.maximumf %5, %6 : vector<2x128xf32>
    %8 = arith.truncf %7 : vector<2x128xf32> to vector<2x128xbf16>
    %c0_6 = arith.constant 0 : index
    %c0_7 = arith.constant 0 : index
    %9 = vector.load %arg4[%c0_6, %c0_7] : memref<2x128xbf16, #tpu.memory_space<vmem>>, vector<2x128xbf16>
    tpu.vector_store %arg4[%c0_6, %c0_7], %8 {strides = array<i32>} : memref<2x128xbf16, #tpu.memory_space<vmem>>, vector<2x128xbf16>,
    return
  }
  func.func @transform_0(%arg0: i32) -> (i32, i32) {
    %c0_i32 = arith.constant 0 : i32
    %c0_i32_0 = arith.constant 0 : i32
    return %arg0, %c0_i32 : i32, i32
  }
  func.func @transform_1(%arg0: i32) -> (i32, i32) {
    %c0_i32 = arith.constant 0 : i32
    %c0_i32_0 = arith.constant 0 : i32
    %c0_i32_1 = arith.constant 0 : i32
    return %c0_i32, %c0_i32_0 : i32, i32
  }
  func.func @transform_2(%arg0: i32) -> (i32, i32) {
    %c0_i32 = arith.constant 0 : i32
    %c0_i32_0 = arith.constant 0 : i32
    %c0_i32_1 = arith.constant 0 : i32
    return %c0_i32, %c0_i32_0 : i32, i32
  }
  func.func @transform_3(%arg0: i32) -> (i32, i32) {
    %c0_i32 = arith.constant 0 : i32
    %c0_i32_0 = arith.constant 0 : i32
    return %arg0, %c0_i32 : i32, i32
  }
}

</mosaic_0001>

<llo_original>
// kernel: encoder_backbone_forward.7
$region0: #{encoder_backbone_forward.7}
  #allocation0 [shape = 'u32[]', space=smem, size = 0x4, offset = 0x4, fixed_abs, tag = 'smem constant byte address 0x4 - core index']
  #allocation1 [shape = 'u32[144,128]{1,0:T(1,128)}', space=vmem, size = 0x12000, scoped, tag = 'internal scratch']
  %s0 = inlined_call_operand.vmem [shape: bf16[128,27], index: 0, kind: input, shape index: {}]
  %s1 = inlined_call_operand.vmem [shape: bf16[27,8], index: 1, kind: input, shape index: {}]
  %s2 = inlined_call_operand.vmem [shape: f32[1,8], index: 2, kind: input, shape index: {}]
  %s3 = inlined_call_operand.vmem [shape: bf16[128,8], index: 3, kind: output, shape index: {}]
  %s4 = sld [smem:[#allocation0]]
  $region22: #{encoder_backbone_forward.7} parent=0
    _
  %s6 = ssub.s32 1, %s4
  %s7 = scalar_select 0, %s6, %s4
  // Predicated region
  $region2: #{encoder_backbone_forward.7} parent=0 // pred_check
    _
  $region3: #{encoder_backbone_forward.7} parent=0 // pred_check_branch
    %9 = sbr.rel (0) target = $region5
  $region4: #{encoder_backbone_forward.7} parent=0 // pred_region
    _
  $region5: #{encoder_backbone_forward.7} parent=0 // pred_fallthru
    _
  // Predicated region
  $region6: #{encoder_backbone_forward.7} parent=0 // pred_check
    _
  $region7: #{encoder_backbone_forward.7} parent=0 // pred_check_branch
    %11 = sbr.rel (0) target = $region9
  $region8: #{encoder_backbone_forward.7} parent=0 // pred_region
    _
  $region9: #{encoder_backbone_forward.7} parent=0 // pred_fallthru
    _
  // Predicated region
  $region10: #{encoder_backbone_forward.7} parent=0 // pred_check
    _
  $region11: #{encoder_backbone_forward.7} parent=0 // pred_check_branch
    %13 = sbr.rel (0) target = $region13
  $region12: #{encoder_backbone_forward.7} parent=0 // pred_region
    _
  $region13: #{encoder_backbone_forward.7} parent=0 // pred_fallthru
    _
  %v15 = vld [vmem:[%s0] sm:$0xf]
  %v16 = vld [vmem:[%s0 + $0x4] sm:$0xf]
  %v17 = vld [vmem:[%s0 + $0x8] sm:$0xf]
  %v18 = vld [vmem:[%s0 + $0xc] sm:$0xf]
  %v19 = vld [vmem:[%s0 + $0x10] sm:$0xf]
  %v20 = vld [vmem:[%s0 + $0x14] sm:$0xf]
  %v21 = vld [vmem:[%s0 + $0x18] sm:$0xf]
  %v22 = vld [vmem:[%s0 + $0x1c] sm:$0xf]
  %v23 = vld [vmem:[%s0 + $0x20] sm:$0xf]
  %v24 = vld [vmem:[%s0 + $0x24] sm:$0xf]
  %v25 = vld [vmem:[%s0 + $0x28] sm:$0xf]
  %v26 = vld [vmem:[%s0 + $0x2c] sm:$0xf]
  %v27 = vld [vmem:[%s0 + $0x30] sm:$0xf]
  %v28 = vld [vmem:[%s0 + $0x34] sm:$0xf]
  %v29 = vld [vmem:[%s0 + $0x38] sm:$0xf]
  %v30 = vld [vmem:[%s0 + $0x3c] sm:$0xf]
  %v31 = vld [vmem:[%s1] sm:$0xf]
  %v32 = vld [vmem:[%s1 + $0x4] sm:$0xf]
  %v33 = vld [vmem:[%s1 + $0x8] sm:$0xf]
  %v34 = vld [vmem:[%s1 + $0xc] sm:$0x3]
  %v35 = vld [vmem:[%s2] sm:$0x1]
  %v37 = vlaneseq
  %v38 = vshrl.u32 %v37, 7
  %v39 = vsub.s32 0, %v38
  %v40 = vrot.slane %v35, %v39
  %v58 = vunpack.c.l.b16 %v15
  %v59 = vunpack.c.l.b16 %v16
  %v60 = vunpack.c.l.b16 %v17
  %v61 = vunpack.c.l.b16 %v18
  %v62 = vunpack.c.l.b16 %v19
  %v63 = vunpack.c.l.b16 %v20
  %v64 = vunpack.c.l.b16 %v21
  %v65 = vunpack.c.l.b16 %v22
  %v66 = vunpack.c.l.b16 %v23
  %v67 = vunpack.c.l.b16 %v24
  %v68 = vunpack.c.l.b16 %v25
  %v69 = vunpack.c.l.b16 %v26
  %v70 = vunpack.c.l.b16 %v27
  %v71 = vunpack.c.l.b16 %v28
  %v72 = vunpack.c.l.b16 %v29
  %v73 = vunpack.c.l.b16 %v30
  %v74 = vpack.c.b16 %v59, %v58
  %v75 = vpack.c.b16 %v61, %v60
  %v76 = vpack.c.b16 %v63, %v62
  %v77 = vpack.c.b16 %v65, %v64
  %v78 = vpack.c.b16 %v67, %v66
  %v79 = vpack.c.b16 %v69, %v68
  %v80 = vpack.c.b16 %v71, %v70
  %v81 = vpack.c.b16 %v73, %v72
  %v86 = vunpack.c.l.b16 %v31
  %v87 = vunpack.c.l.b16 %v32
  %v88 = vunpack.c.l.b16 %v33
  %v89 = vunpack.c.l.b16 %v34
  %v90 = vpack.c.b16 %v87, %v86
  %v91 = vpack.c.b16 %v89, %v88
  %vm93 = vcmask 220160
  %v95 = vsel %vm93, %v74, 0
  %v98 = vsel %vm93, %v75, 0
  %v101 = vsel %vm93, %v76, 0
  %v104 = vsel %vm93, %v77, 0
  %v107 = vsel %vm93, %v78, 0
  %v110 = vsel %vm93, %v79, 0
  %v113 = vsel %vm93, %v80, 0
  %v116 = vsel %vm93, %v81, 0
  %vm118 = vcmask 1044480
  %vm119 = vcmask 1045504
  %v120 = vsel %vm118, 4294967295, 65535
  %v121 = vsel %vm119, %v120, 0
  %v123 = vand.u32 %v91, %v121
  %125 = vmatprep.subr.bf16.mxu0 0
  %126 = vmatpush1.bf16.msra.mxu0 %v90
  %127 = vmatprep.subr.bf16.mxu0 0
  %128 = vmatpush1.bf16.msra.mxu0 %v123
  %129 = vmatprep.subr.bf16.mxu0 0
  %130 = vmatpush1.bf16.msra.mxu0 0
  %131 = vmatprep.subr.bf16.mxu0 0
  %132 = vmatpush1.bf16.msra.mxu0 0
  %133 = vmatprep.subr.bf16.mxu0 0
  %134 = vmatpush1.bf16.msra.mxu0 0
  %135 = vmatprep.subr.bf16.mxu0 0
  %136 = vmatpush1.bf16.msra.mxu0 0
  %137 = vmatprep.subr.bf16.mxu0 0
  %138 = vmatpush1.bf16.msra.mxu0 0
  %139 = vmatprep.subr.bf16.mxu0 0
  %140 = vmatpush1.bf16.msra.mxu0 0
  %141 = vmatprep.subr.bf16.mxu0 0
  %142 = vmatpush1.bf16.msra.mxu0 0
  %143 = vmatprep.subr.bf16.mxu0 0
  %144 = vmatpush1.bf16.msra.mxu0 0
  %145 = vmatprep.subr.bf16.mxu0 0
  %146 = vmatpush1.bf16.msra.mxu0 0
  %147 = vmatprep.subr.bf16.mxu0 0
  %148 = vmatpush1.bf16.msra.mxu0 0
  %149 = vmatprep.subr.bf16.mxu0 0
  %150 = vmatpush1.bf16.msra.mxu0 0
  %151 = vmatprep.subr.bf16.mxu0 0
  %152 = vmatpush1.bf16.msra.mxu0 0
  %153 = vmatprep.subr.bf16.mxu0 0
  %154 = vmatpush1.bf16.msra.mxu0 0
  %155 = vmatprep.subr.bf16.mxu0 0
  %156 = vmatpush1.bf16.msra.mxu0 0
  %157 = vmatprep.mubr.bf16.mxu0 0
  %158 = vmatmul.mubr.bf16.gmra.mrb[0].mxu0 %v95
  %v159 = vpop.f32.mrb[0].mxu0
  %v160 = vadd.f32 %v40, %v159
  %v161 = vpop.f32.mrb[0].mxu0
  %v162 = vpop.f32.mrb[0].mxu0
  %v163 = vadd.f32 %v40, %v162
  %v164 = vpop.f32.mrb[0].mxu0
  %165 = vmatprep.mubr.bf16.mxu0 0
  %166 = vmatmul.mubr.bf16.gmra.mrb[0].mxu0 %v98
  %v167 = vpop.f32.mrb[0].mxu0
  %v168 = vadd.f32 %v40, %v167
  %v169 = vpop.f32.mrb[0].mxu0
  %v170 = vpop.f32.mrb[0].mxu0
  %v171 = vadd.f32 %v40, %v170
  %v172 = vpop.f32.mrb[0].mxu0
  %173 = vmatprep.mubr.bf16.mxu0 0
  %174 = vmatmul.mubr.bf16.gmra.mrb[0].mxu0 %v101
  %v175 = vpop.f32.mrb[0].mxu0
  %v176 = vadd.f32 %v40, %v175
  %v177 = vpop.f32.mrb[0].mxu0
  %v178 = vpop.f32.mrb[0].mxu0
  %v179 = vadd.f32 %v40, %v178
  %v180 = vpop.f32.mrb[0].mxu0
  %181 = vmatprep.mubr.bf16.mxu0 0
  %182 = vmatmul.mubr.bf16.gmra.mrb[0].mxu0 %v104
  %v183 = vpop.f32.mrb[0].mxu0
  %v184 = vadd.f32 %v40, %v183
  %v185 = vpop.f32.mrb[0].mxu0
  %v186 = vpop.f32.mrb[0].mxu0
  %v187 = vadd.f32 %v40, %v186
  %v188 = vpop.f32.mrb[0].mxu0
  %189 = vmatprep.mubr.bf16.mxu0 0
  %190 = vmatmul.mubr.bf16.gmra.mrb[0].mxu0 %v107
  %v191 = vpop.f32.mrb[0].mxu0
  %v192 = vadd.f32 %v40, %v191
  %v193 = vpop.f32.mrb[0].mxu0
  %v194 = vpop.f32.mrb[0].mxu0
  %v195 = vadd.f32 %v40, %v194
  %v196 = vpop.f32.mrb[0].mxu0
  %197 = vmatprep.mubr.bf16.mxu0 0
  %198 = vmatmul.mubr.bf16.gmra.mrb[0].mxu0 %v110
  %v199 = vpop.f32.mrb[0].mxu0
  %v200 = vadd.f32 %v40, %v199
  %v201 = vpop.f32.mrb[0].mxu0
  %v202 = vpop.f32.mrb[0].mxu0
  %v203 = vadd.f32 %v40, %v202
  %v204 = vpop.f32.mrb[0].mxu0
  %205 = vmatprep.mubr.bf16.mxu0 0
  %206 = vmatmul.mubr.bf16.gmra.mrb[0].mxu0 %v113
  %v207 = vpop.f32.mrb[0].mxu0
  %v208 = vadd.f32 %v40, %v207
  %v209 = vpop.f32.mrb[0].mxu0
  %v210 = vpop.f32.mrb[0].mxu0
  %v211 = vadd.f32 %v40, %v210
  %v212 = vpop.f32.mrb[0].mxu0
  %213 = vmatprep.mubr.bf16.mxu0 0
  %214 = vmatmul.mubr.bf16.gmra.mrb[0].mxu0 %v116
  %v215 = vpop.f32.mrb[0].mxu0
  %v216 = vadd.f32 %v40, %v215
  %v217 = vpop.f32.mrb[0].mxu0
  %v218 = vpop.f32.mrb[0].mxu0
  %v219 = vadd.f32 %v40, %v218
  %v220 = vpop.f32.mrb[0].mxu0
  %221 = vdwg.mxu0
  %v222 = vmax.f32 %v160, 0.0
  %v223 = vmax.f32 %v163, 0.0
  %v224 = vmax.f32 %v168, 0.0
  %v225 = vmax.f32 %v171, 0.0
  %v226 = vmax.f32 %v176, 0.0
  %v227 = vmax.f32 %v179, 0.0
  %v228 = vmax.f32 %v184, 0.0
  %v229 = vmax.f32 %v187, 0.0
  %v230 = vmax.f32 %v192, 0.0
  %v231 = vmax.f32 %v195, 0.0
  %v232 = vmax.f32 %v200, 0.0
  %v233 = vmax.f32 %v203, 0.0
  %v234 = vmax.f32 %v208, 0.0
  %v235 = vmax.f32 %v211, 0.0
  %v236 = vmax.f32 %v216, 0.0
  %v237 = vmax.f32 %v219, 0.0
  %v238 = vpack.c.bf16 %v223, %v222
  %v239 = vpack.c.bf16 %v225, %v224
  %v240 = vpack.c.bf16 %v227, %v226
  %v241 = vpack.c.bf16 %v229, %v228
  %v242 = vpack.c.bf16 %v231, %v230
  %v243 = vpack.c.bf16 %v233, %v232
  %v244 = vpack.c.bf16 %v235, %v234
  %v245 = vpack.c.bf16 %v237, %v236
  %v254 = vunpack.c.l.b16 %v238
  %v255 = vunpack.c.h.b16 %v238
  %v256 = vunpack.c.l.b16 %v239
  %v257 = vunpack.c.h.b16 %v239
  %v258 = vunpack.c.l.b16 %v240
  %v259 = vunpack.c.h.b16 %v240
  %v260 = vunpack.c.l.b16 %v241
  %v261 = vunpack.c.h.b16 %v241
  %v262 = vunpack.c.l.b16 %v242
  %v263 = vunpack.c.h.b16 %v242
  %v264 = vunpack.c.l.b16 %v243
  %v265 = vunpack.c.h.b16 %v243
  %v266 = vunpack.c.l.b16 %v244
  %v267 = vunpack.c.h.b16 %v244
  %v268 = vunpack.c.l.b16 %v245
  %v269 = vunpack.c.h.b16 %v245
  %v270 = vpack.c.b16 %v254, %v254
  %v271 = vpack.c.b16 %v255, %v255
  %v272 = vpack.c.b16 %v256, %v256
  %v273 = vpack.c.b16 %v257, %v257
  %v274 = vpack.c.b16 %v258, %v258
  %v275 = vpack.c.b16 %v259, %v259
  %v276 = vpack.c.b16 %v260, %v260
  %v277 = vpack.c.b16 %v261, %v261
  %v278 = vpack.c.b16 %v262, %v262
  %v279 = vpack.c.b16 %v263, %v263
  %v280 = vpack.c.b16 %v264, %v264
  %v281 = vpack.c.b16 %v265, %v265
  %v282 = vpack.c.b16 %v266, %v266
  %v283 = vpack.c.b16 %v267, %v267
  %v284 = vpack.c.b16 %v268, %v268
  %v285 = vpack.c.b16 %v269, %v269
  %vm302 = vcmask 60416
  %303 = vst.msk [vmem:[%s3] sm:$0xf] %vm302, %v270
  %304 = vst.msk [vmem:[%s3 + $0x4] sm:$0xf] %vm302, %v271
  %305 = vst.msk [vmem:[%s3 + $0x8] sm:$0xf] %vm302, %v272
  %306 = vst.msk [vmem:[%s3 + $0xc] sm:$0xf] %vm302, %v273
  %307 = vst.msk [vmem:[%s3 + $0x10] sm:$0xf] %vm302, %v274
  %308 = vst.msk [vmem:[%s3 + $0x14] sm:$0xf] %vm302, %v275
  %309 = vst.msk [vmem:[%s3 + $0x18] sm:$0xf] %vm302, %v276
  %310 = vst.msk [vmem:[%s3 + $0x1c] sm:$0xf] %vm302, %v277
  %311 = vst.msk [vmem:[%s3 + $0x20] sm:$0xf] %vm302, %v278
  %312 = vst.msk [vmem:[%s3 + $0x24] sm:$0xf] %vm302, %v279
  %313 = vst.msk [vmem:[%s3 + $0x28] sm:$0xf] %vm302, %v280
  %314 = vst.msk [vmem:[%s3 + $0x2c] sm:$0xf] %vm302, %v281
  %315 = vst.msk [vmem:[%s3 + $0x30] sm:$0xf] %vm302, %v282
  %316 = vst.msk [vmem:[%s3 + $0x34] sm:$0xf] %vm302, %v283
  %317 = vst.msk [vmem:[%s3 + $0x38] sm:$0xf] %vm302, %v284
  %318 = vst.msk [vmem:[%s3 + $0x3c] sm:$0xf] %vm302, %v285
  // Predicated region
  $region14: #{encoder_backbone_forward.7} parent=0 // pred_check
    _
  $region15: #{encoder_backbone_forward.7} parent=0 // pred_check_branch
    %320 = sbr.rel (0) target = $region17
  $region16: #{encoder_backbone_forward.7} parent=0 // pred_region
    _
  $region17: #{encoder_backbone_forward.7} parent=0 // pred_fallthru
    _
  // Predicated region
  $region18: #{encoder_backbone_forward.7} parent=0 // pred_check
    _
  $region19: #{encoder_backbone_forward.7} parent=0 // pred_check_branch
    %322 = sbr.rel (0) target = $region21
  $region20: #{encoder_backbone_forward.7} parent=0 // pred_region
    _
  $region21: #{encoder_backbone_forward.7} parent=0 // pred_fallthru
    _

// kernel: encoder_backbone_forward.8
$region0: #{encoder_backbone_forward.8}
  #allocation0 [shape = 'u32[]', space=smem, size = 0x4, offset = 0x4, fixed_abs, tag = 'smem constant byte address 0x4 - core index']
  #allocation1 [shape = 'u32[144,128]{1,0:T(1,128)}', space=vmem, size = 0x12000, scoped, tag = 'internal scratch']
  %s0 = inlined_call_operand.vmem [shape: bf16[32,72], index: 0, kind: input, shape index: {}]
  %s1 = inlined_call_operand.vmem [shape: bf16[72,16], index: 1, kind: input, shape index: {}]
  %s2 = inlined_call_operand.vmem [shape: f32[1,16], index: 2, kind: input, shape index: {}]
  %s3 = inlined_call_operand.vmem [shape: bf16[32,16], index: 3, kind: output, shape index: {}]
  %s4 = sld [smem:[#allocation0]]
  $region22: #{encoder_backbone_forward.8} parent=0
    _
  %s6 = ssub.s32 1, %s4
  %s7 = scalar_select 0, %s6, %s4
  // Predicated region
  $region2: #{encoder_backbone_forward.8} parent=0 // pred_check
    _
  $region3: #{encoder_backbone_forward.8} parent=0 // pred_check_branch
    %9 = sbr.rel (0) target = $region5
  $region4: #{encoder_backbone_forward.8} parent=0 // pred_region
    _
  $region5: #{encoder_backbone_forward.8} parent=0 // pred_fallthru
    _
  // Predicated region
  $region6: #{encoder_backbone_forward.8} parent=0 // pred_check
    _
  $region7: #{encoder_backbone_forward.8} parent=0 // pred_check_branch
    %11 = sbr.rel (0) target = $region9
  $region8: #{encoder_backbone_forward.8} parent=0 // pred_region
    _
  $region9: #{encoder_backbone_forward.8} parent=0 // pred_fallthru
    _
  // Predicated region
  $region10: #{encoder_backbone_forward.8} parent=0 // pred_check
    _
  $region11: #{encoder_backbone_forward.8} parent=0 // pred_check_branch
    %13 = sbr.rel (0) target = $region13
  $region12: #{encoder_backbone_forward.8} parent=0 // pred_region
    _
  $region13: #{encoder_backbone_forward.8} parent=0 // pred_fallthru
    _
  %v15 = vld [vmem:[%s0] sm:$0xf]
  %v16 = vld [vmem:[%s0 + $0x4] sm:$0xf]
  %v17 = vld [vmem:[%s0 + $0x8] sm:$0xf]
  %v18 = vld [vmem:[%s0 + $0xc] sm:$0xf]
  %v19 = vld [vmem:[%s1] sm:$0xf]
  %v20 = vld [vmem:[%s1 + $0x4] sm:$0xf]
  %v21 = vld [vmem:[%s1 + $0x8] sm:$0xf]
  %v22 = vld [vmem:[%s1 + $0xc] sm:$0xf]
  %v23 = vld [vmem:[%s1 + $0x10] sm:$0xf]
  %v24 = vld [vmem:[%s1 + $0x14] sm:$0xf]
  %v25 = vld [vmem:[%s1 + $0x18] sm:$0xf]
  %v26 = vld [vmem:[%s1 + $0x1c] sm:$0xf]
  %v27 = vld [vmem:[%s1 + $0x20] sm:$0xf]
  %v28 = vld [vmem:[%s2] sm:$0x1]
  %v30 = vlaneseq
  %v31 = vshrl.u32 %v30, 7
  %v32 = vsub.s32 0, %v31
  %v33 = vrot.slane %v28, %v32
  %v39 = vunpack.c.l.b16 %v15
  %v40 = vunpack.c.l.b16 %v16
  %v41 = vunpack.c.l.b16 %v17
  %v42 = vunpack.c.l.b16 %v18
  %v43 = vpack.c.b16 %v40, %v39
  %v44 = vpack.c.b16 %v42, %v41
  %v54 = vunpack.c.l.b16 %v19
  %v55 = vunpack.c.l.b16 %v20
  %v56 = vunpack.c.l.b16 %v21
  %v57 = vunpack.c.l.b16 %v22
  %v58 = vunpack.c.l.b16 %v23
  %v59 = vunpack.c.l.b16 %v24
  %v60 = vunpack.c.l.b16 %v25
  %v61 = vunpack.c.l.b16 %v26
  %v62 = vunpack.c.l.b16 %v27
  %v63 = vpack.c.b16 %v55, %v54
  %v64 = vpack.c.b16 %v57, %v56
  %v65 = vpack.c.b16 %v59, %v58
  %v66 = vpack.c.b16 %v61, %v60
  %v67 = vpack.c.b16 %v62, %v62
  %vm72 = vcmask 588800
  %v74 = vsel %vm72, %v43, 0
  %v77 = vsel %vm72, %v44, 0
  %vm79 = vcmask 1043456
  %v81 = vsel %vm79, %v67, 0
  %83 = vmatprep.subr.bf16.mxu0 0
  %84 = vmatpush1.bf16.msra.mxu0 %v63
  %85 = vmatprep.subr.bf16.mxu0 0
  %86 = vmatpush1.bf16.msra.mxu0 %v64
  %87 = vmatprep.subr.bf16.mxu0 0
  %88 = vmatpush1.bf16.msra.mxu0 %v65
  %89 = vmatprep.subr.bf16.mxu0 0
  %90 = vmatpush1.bf16.msra.mxu0 %v66
  %91 = vmatprep.subr.bf16.mxu0 0
  %92 = vmatpush1.bf16.msra.mxu0 %v81
  %93 = vmatprep.subr.bf16.mxu0 0
  %94 = vmatpush1.bf16.msra.mxu0 0
  %95 = vmatprep.subr.bf16.mxu0 0
  %96 = vmatpush1.bf16.msra.mxu0 0
  %97 = vmatprep.subr.bf16.mxu0 0
  %98 = vmatpush1.bf16.msra.mxu0 0
  %99 = vmatprep.subr.bf16.mxu0 0
  %100 = vmatpush1.bf16.msra.mxu0 0
  %101 = vmatprep.subr.bf16.mxu0 0
  %102 = vmatpush1.bf16.msra.mxu0 0
  %103 = vmatprep.subr.bf16.mxu0 0
  %104 = vmatpush1.bf16.msra.mxu0 0
  %105 = vmatprep.subr.bf16.mxu0 0
  %106 = vmatpush1.bf16.msra.mxu0 0
  %107 = vmatprep.subr.bf16.mxu0 0
  %108 = vmatpush1.bf16.msra.mxu0 0
  %109 = vmatprep.subr.bf16.mxu0 0
  %110 = vmatpush1.bf16.msra.mxu0 0
  %111 = vmatprep.subr.bf16.mxu0 0
  %112 = vmatpush1.bf16.msra.mxu0 0
  %113 = vmatprep.subr.bf16.mxu0 0
  %114 = vmatpush1.bf16.msra.mxu0 0
  %115 = vmatprep.mubr.bf16.mxu0 0
  %116 = vmatmul.mubr.bf16.gmra.mrb[0].mxu0 %v74
  %v117 = vpop.f32.mrb[0].mxu0
  %v118 = vadd.f32 %v33, %v117
  %v119 = vpop.f32.mrb[0].mxu0
  %v120 = vpop.f32.mrb[0].mxu0
  %v121 = vadd.f32 %v33, %v120
  %v122 = vpop.f32.mrb[0].mxu0
  %123 = vmatprep.mubr.bf16.mxu0 0
  %124 = vmatmul.mubr.bf16.gmra.mrb[0].mxu0 %v77
  %v125 = vpop.f32.mrb[0].mxu0
  %v126 = vadd.f32 %v33, %v125
  %v127 = vpop.f32.mrb[0].mxu0
  %v128 = vpop.f32.mrb[0].mxu0
  %v129 = vadd.f32 %v33, %v128
  %v130 = vpop.f32.mrb[0].mxu0
  %131 = vdwg.mxu0
  %v132 = vmax.f32 %v118, 0.0
  %v133 = vmax.f32 %v121, 0.0
  %v134 = vmax.f32 %v126, 0.0
  %v135 = vmax.f32 %v129, 0.0
  %v136 = vpack.c.bf16 %v133, %v132
  %v137 = vpack.c.bf16 %v135, %v134
  %v140 = vunpack.c.l.b16 %v136
  %v141 = vunpack.c.h.b16 %v136
  %v142 = vunpack.c.l.b16 %v137
  %v143 = vunpack.c.h.b16 %v137
  %v144 = vpack.c.b16 %v140, %v140
  %v145 = vpack.c.b16 %v141, %v141
  %v146 = vpack.c.b16 %v142, %v142
  %v147 = vpack.c.b16 %v143, %v143
  %vm152 = vcmask 125952
  %153 = vst.msk [vmem:[%s3] sm:$0xf] %vm152, %v144
  %154 = vst.msk [vmem:[%s3 + $0x4] sm:$0xf] %vm152, %v145
  %155 = vst.msk [vmem:[%s3 + $0x8] sm:$0xf] %vm152, %v146
  %156 = vst.msk [vmem:[%s3 + $0xc] sm:$0xf] %vm152, %v147
  // Predicated region
  $region14: #{encoder_backbone_forward.8} parent=0 // pred_check
    _
  $region15: #{encoder_backbone_forward.8} parent=0 // pred_check_branch
    %158 = sbr.rel (0) target = $region17
  $region16: #{encoder_backbone_forward.8} parent=0 // pred_region
    _
  $region17: #{encoder_backbone_forward.8} parent=0 // pred_fallthru
    _
  // Predicated region
  $region18: #{encoder_backbone_forward.8} parent=0 // pred_check
    _
  $region19: #{encoder_backbone_forward.8} parent=0 // pred_check_branch
    %160 = sbr.rel (0) target = $region21
  $region20: #{encoder_backbone_forward.8} parent=0 // pred_region
    _
  $region21: #{encoder_backbone_forward.8} parent=0 // pred_fallthru
    _

// kernel: encoder_backbone_forward.9
$region0: #{encoder_backbone_forward.9}
  #allocation0 [shape = 'u32[]', space=smem, size = 0x4, offset = 0x4, fixed_abs, tag = 'smem constant byte address 0x4 - core index']
  #allocation1 [shape = 'u32[144,128]{1,0:T(1,128)}', space=vmem, size = 0x12000, scoped, tag = 'internal scratch']
  %s0 = inlined_call_operand.vmem [shape: bf16[8,144], index: 0, kind: input, shape index: {}]
  %s1 = inlined_call_operand.vmem [shape: bf16[144,32], index: 1, kind: input, shape index: {}]
  %s2 = inlined_call_operand.vmem [shape: f32[1,32], index: 2, kind: input, shape index: {}]
  %s3 = inlined_call_operand.vmem [shape: bf16[8,32], index: 3, kind: output, shape index: {}]
  %s4 = sld [smem:[#allocation0]]
  $region22: #{encoder_backbone_forward.9} parent=0
    _
  %s6 = ssub.s32 1, %s4
  %s7 = scalar_select 0, %s6, %s4
  // Predicated region
  $region2: #{encoder_backbone_forward.9} parent=0 // pred_check
    _
  $region3: #{encoder_backbone_forward.9} parent=0 // pred_check_branch
    %9 = sbr.rel (0) target = $region5
  $region4: #{encoder_backbone_forward.9} parent=0 // pred_region
    _
  $region5: #{encoder_backbone_forward.9} parent=0 // pred_fallthru
    _
  // Predicated region
  $region6: #{encoder_backbone_forward.9} parent=0 // pred_check
    _
  $region7: #{encoder_backbone_forward.9} parent=0 // pred_check_branch
    %11 = sbr.rel (0) target = $region9
  $region8: #{encoder_backbone_forward.9} parent=0 // pred_region
    _
  $region9: #{encoder_backbone_forward.9} parent=0 // pred_fallthru
    _
  // Predicated region
  $region10: #{encoder_backbone_forward.9} parent=0 // pred_check
    _
  $region11: #{encoder_backbone_forward.9} parent=0 // pred_check_branch
    %13 = sbr.rel (0) target = $region13
  $region12: #{encoder_backbone_forward.9} parent=0 // pred_region
    _
  $region13: #{encoder_backbone_forward.9} parent=0 // pred_fallthru
    _
  %v15 = vld [vmem:[%s0] sm:$0xff]
  %v16 = vld [vmem:[%s1] sm:$0xf]
  %v17 = vld [vmem:[%s1 + $0x4] sm:$0xf]
  %v18 = vld [vmem:[%s1 + $0x8] sm:$0xf]
  %v19 = vld [vmem:[%s1 + $0xc] sm:$0xf]
  %v20 = vld [vmem:[%s1 + $0x10] sm:$0xf]
  %v21 = vld [vmem:[%s1 + $0x14] sm:$0xf]
  %v22 = vld [vmem:[%s1 + $0x18] sm:$0xf]
  %v23 = vld [vmem:[%s1 + $0x1c] sm:$0xf]
  %v24 = vld [vmem:[%s1 + $0x20] sm:$0xf]
  %v25 = vld [vmem:[%s1 + $0x24] sm:$0xf]
  %v26 = vld [vmem:[%s1 + $0x28] sm:$0xf]
  %v27 = vld [vmem:[%s1 + $0x2c] sm:$0xf]
  %v28 = vld [vmem:[%s1 + $0x30] sm:$0xf]
  %v29 = vld [vmem:[%s1 + $0x34] sm:$0xf]
  %v30 = vld [vmem:[%s1 + $0x38] sm:$0xf]
  %v31 = vld [vmem:[%s1 + $0x3c] sm:$0xf]
  %v32 = vld [vmem:[%s1 + $0x40] sm:$0xf]
  %v33 = vld [vmem:[%s1 + $0x44] sm:$0xf]
  %v34 = vld [vmem:[%s2] sm:$0x1]
  %v36 = vlaneseq
  %v37 = vshrl.u32 %v36, 7
  %v38 = vsub.s32 0, %v37
  %v39 = vrot.slane %v34, %v38
  %v42 = vunpack.c.l.b16 %v15
  %v43 = vunpack.c.h.b16 %v15
  %v44 = vpack.c.b16 %v42, %v42
  %v45 = vpack.c.b16 %v43, %v43
  %v65 = vunpack.c.l.b16 %v16
  %v66 = vunpack.c.l.b16 %v17
  %v67 = vunpack.c.l.b16 %v18
  %v68 = vunpack.c.l.b16 %v19
  %v69 = vunpack.c.l.b16 %v20
  %v70 = vunpack.c.l.b16 %v21
  %v71 = vunpack.c.l.b16 %v22
  %v72 = vunpack.c.l.b16 %v23
  %v73 = vunpack.c.l.b16 %v24
  %v74 = vunpack.c.l.b16 %v25
  %v75 = vunpack.c.l.b16 %v26
  %v76 = vunpack.c.l.b16 %v27
  %v77 = vunpack.c.l.b16 %v28
  %v78 = vunpack.c.l.b16 %v29
  %v79 = vunpack.c.l.b16 %v30
  %v80 = vunpack.c.l.b16 %v31
  %v81 = vunpack.c.l.b16 %v32
  %v82 = vunpack.c.l.b16 %v33
  %v83 = vpack.c.b16 %v66, %v65
  %v84 = vpack.c.b16 %v68, %v67
  %v85 = vpack.c.b16 %v70, %v69
  %v86 = vpack.c.b16 %v72, %v71
  %v87 = vpack.c.b16 %v74, %v73
  %v88 = vpack.c.b16 %v76, %v75
  %v89 = vpack.c.b16 %v78, %v77
  %v90 = vpack.c.b16 %v80, %v79
  %v91 = vpack.c.b16 %v82, %v81
  %vm101 = vcmask 130048
  %v103 = vsel %vm101, %v45, 0
  %105 = vmatprep.subr.bf16.mxu0 0
  %106 = vmatpush1.bf16.msra.mxu0 %v83
  %107 = vmatprep.subr.bf16.mxu0 0
  %108 = vmatpush1.bf16.msra.mxu0 %v84
  %109 = vmatprep.subr.bf16.mxu0 0
  %110 = vmatpush1.bf16.msra.mxu0 %v85
  %111 = vmatprep.subr.bf16.mxu0 0
  %112 = vmatpush1.bf16.msra.mxu0 %v86
  %113 = vmatprep.subr.bf16.mxu0 0
  %114 = vmatpush1.bf16.msra.mxu0 %v87
  %115 = vmatprep.subr.bf16.mxu0 0
  %116 = vmatpush1.bf16.msra.mxu0 %v88
  %117 = vmatprep.subr.bf16.mxu0 0
  %118 = vmatpush1.bf16.msra.mxu0 %v89
  %119 = vmatprep.subr.bf16.mxu0 0
  %120 = vmatpush1.bf16.msra.mxu0 %v90
  %121 = vmatprep.subr.bf16.mxu0 0
  %122 = vmatpush1.bf16.msra.mxu0 %v91
  %123 = vmatprep.subr.bf16.mxu0 0
  %124 = vmatpush1.bf16.msra.mxu0 0
  %125 = vmatprep.subr.bf16.mxu0 0
  %126 = vmatpush1.bf16.msra.mxu0 0
  %127 = vmatprep.subr.bf16.mxu0 0
  %128 = vmatpush1.bf16.msra.mxu0 0
  %129 = vmatprep.subr.bf16.mxu0 0
  %130 = vmatpush1.bf16.msra.mxu0 0
  %131 = vmatprep.subr.bf16.mxu0 0
  %132 = vmatpush1.bf16.msra.mxu0 0
  %133 = vmatprep.subr.bf16.mxu0 0
  %134 = vmatpush1.bf16.msra.mxu0 0
  %135 = vmatprep.subr.bf16.mxu0 0
  %136 = vmatpush1.bf16.msra.mxu0 0
  %137 = vmatprep.mubr.bf16.mxu0 %v103
  %138 = vmatmul.mubr.bf16.gmra.mrb[0].mxu0 %v44
  %v139 = vpop.f32.mrb[0].mxu0
  %v140 = vadd.f32 %v39, %v139
  %v141 = vpop.f32.mrb[0].mxu0
  %v142 = vpop.f32.mrb[0].mxu0
  %v143 = vpop.f32.mrb[0].mxu0
  %144 = vdwg.mxu0
  %v145 = vmax.f32 %v140, 0.0
  %v146 = vpack.c.bf16 %v145, %v145
  %vm147 = vcmask 257024
  %148 = vst.msk [vmem:[%s3] sm:$0xf] %vm147, %v146
  // Predicated region
  $region14: #{encoder_backbone_forward.9} parent=0 // pred_check
    _
  $region15: #{encoder_backbone_forward.9} parent=0 // pred_check_branch
    %150 = sbr.rel (0) target = $region17
  $region16: #{encoder_backbone_forward.9} parent=0 // pred_region
    _
  $region17: #{encoder_backbone_forward.9} parent=0 // pred_fallthru
    _
  // Predicated region
  $region18: #{encoder_backbone_forward.9} parent=0 // pred_check
    _
  $region19: #{encoder_backbone_forward.9} parent=0 // pred_check_branch
    %152 = sbr.rel (0) target = $region21
  $region20: #{encoder_backbone_forward.9} parent=0 // pred_region
    _
  $region21: #{encoder_backbone_forward.9} parent=0 // pred_fallthru
    _

// kernel: encoder_backbone_forward.11
$region0: #{encoder_backbone_forward.11}
  #allocation0 [shape = 'u32[]', space=smem, size = 0x4, offset = 0x4, fixed_abs, tag = 'smem constant byte address 0x4 - core index']
  #allocation1 [shape = 'u32[144,128]{1,0:T(1,128)}', space=vmem, size = 0x12000, scoped, tag = 'internal scratch']
  %s0 = inlined_call_operand.vmem [shape: bf16[288,64], index: 0, kind: input, shape index: {}]
  %s1 = inlined_call_operand.vmem [shape: f32[1,64], index: 1, kind: input, shape index: {}]
  %s2 = inlined_call_operand.vmem [shape: bf16[2,1,1,288], index: 2, kind: input, shape index: {}]
  %s3 = inlined_call_operand.vmem [shape: bf16[2,64], index: 3, kind: output, shape index: {}]
  %s4 = sld [smem:[#allocation0]]
  $region22: #{encoder_backbone_forward.11} parent=0
    _
  %s6 = ssub.s32 1, %s4
  %s7 = scalar_select 0, %s6, %s4
  $region1: #{encoder_backbone_forward.11} parent=0
    #allocation2 [shape = 'u8[1536]{0}', space=vmem, size = 0x800, dematerialized = true, scoped, tag = 'FusionAdapter Buffer %fusion.3 = bf16[2,288]{1,0:T(2,128)(2,1)} fusion(%param_2.3), kind=kLoop, calls=%fused_computation.6.clone, metadata={op_name="jit(encoder_backbone_forward)/reshape" stack_frame_id=12}']
    // Predicated region
    $region2: #{encoder_backbone_forward.11} parent=1 // pred_check
      _
    $region3: #{encoder_backbone_forward.11} parent=1 // pred_check_branch
      %9 = sbr.rel (0) target = $region5
    $region4: #{encoder_backbone_forward.11} parent=1 // pred_region
      _
    $region5: #{encoder_backbone_forward.11} parent=1 // pred_fallthru
      _
    // Predicated region
    $region6: #{encoder_backbone_forward.11} parent=1 // pred_check
      _
    $region7: #{encoder_backbone_forward.11} parent=1 // pred_check_branch
      %11 = sbr.rel (0) target = $region9
    $region8: #{encoder_backbone_forward.11} parent=1 // pred_region
      _
    $region9: #{encoder_backbone_forward.11} parent=1 // pred_fallthru
      _
    // Predicated region
    $region10: #{encoder_backbone_forward.11} parent=1 // pred_check
      _
    $region11: #{encoder_backbone_forward.11} parent=1 // pred_check_branch
      %13 = sbr.rel (0) target = $region13
    $region12: #{encoder_backbone_forward.11} parent=1 // pred_region
      _
    $region13: #{encoder_backbone_forward.11} parent=1 // pred_fallthru
      _
    %s15 = sor.u32 3, 1
    %s16 = sand.u32 %s15, 1
    %v17 = vld [vmem:[%s2] sm:%s16]
    %v18 = vunpack.c.l.bf16 %v17
    %v19 = vunpack.c.h.bf16 %v17
    %v20 = vpack.c.bf16 0.0, %v18
    %22 = vst [vmem:[#allocation2] sm:$0x1] %v20
    %s23 = scalar_lea.vmem %s2, 1
    %s25 = sor.u32 3, 1
    %s26 = sand.u32 %s25, 1
    %v27 = vld [vmem:[%s23] sm:%s26]
    %v28 = vunpack.c.l.bf16 %v27
    %v29 = vunpack.c.h.bf16 %v27
    %s30 = scalar_lea.vmem [#allocation2], 1
    %v31 = vpack.c.bf16 0.0, %v28
    %33 = vst [vmem:[%s30] sm:$0x1] %v31
    %s34 = scalar_lea.vmem %s2, 2
    %s36 = sor.u32 3, 1
    %s37 = sand.u32 %s36, 1
    %v38 = vld [vmem:[%s34] sm:%s37]
    %v39 = vunpack.c.l.bf16 %v38
    %v40 = vunpack.c.h.bf16 %v38
    %s41 = scalar_lea.vmem [#allocation2], 2
    %v42 = vpack.c.bf16 0.0, %v39
    %44 = vst [vmem:[%s41] sm:$0x1] %v42
    %v46 = vld [vmem:[#allocation2] sm:$0x7]
    %v47 = vld [vmem:[%s0] sm:$0xf]
    %v48 = vld [vmem:[%s0 + $0x4] sm:$0xf]
    %v49 = vld [vmem:[%s0 + $0x8] sm:$0xf]
    %v50 = vld [vmem:[%s0 + $0xc] sm:$0xf]
    %v51 = vld [vmem:[%s0 + $0x10] sm:$0xf]
    %v52 = vld [vmem:[%s0 + $0x14] sm:$0xf]
    %v53 = vld [vmem:[%s0 + $0x18] sm:$0xf]
    %v54 = vld [vmem:[%s0 + $0x1c] sm:$0xf]
    %v55 = vld [vmem:[%s0 + $0x20] sm:$0xf]
    %v56 = vld [vmem:[%s0 + $0x24] sm:$0xf]
    %v57 = vld [vmem:[%s0 + $0x28] sm:$0xf]
    %v58 = vld [vmem:[%s0 + $0x2c] sm:$0xf]
    %v59 = vld [vmem:[%s0 + $0x30] sm:$0xf]
    %v60 = vld [vmem:[%s0 + $0x34] sm:$0xf]
    %v61 = vld [vmem:[%s0 + $0x38] sm:$0xf]
    %v62 = vld [vmem:[%s0 + $0x3c] sm:$0xf]
    %v63 = vld [vmem:[%s0 + $0x40] sm:$0xf]
    %v64 = vld [vmem:[%s0 + $0x44] sm:$0xf]
    %v65 = vld [vmem:[%s0 + $0x48] sm:$0xf]
    %v66 = vld [vmem:[%s0 + $0x4c] sm:$0xf]
    %v67 = vld [vmem:[%s0 + $0x50] sm:$0xf]
    %v68 = vld [vmem:[%s0 + $0x54] sm:$0xf]
    %v69 = vld [vmem:[%s0 + $0x58] sm:$0xf]
    %v70 = vld [vmem:[%s0 + $0x5c] sm:$0xf]
    %v71 = vld [vmem:[%s0 + $0x60] sm:$0xf]
    %v72 = vld [vmem:[%s0 + $0x64] sm:$0xf]
    %v73 = vld [vmem:[%s0 + $0x68] sm:$0xf]
    %v74 = vld [vmem:[%s0 + $0x6c] sm:$0xf]
    %v75 = vld [vmem:[%s0 + $0x70] sm:$0xf]
    %v76 = vld [vmem:[%s0 + $0x74] sm:$0xf]
    %v77 = vld [vmem:[%s0 + $0x78] sm:$0xf]
    %v78 = vld [vmem:[%s0 + $0x7c] sm:$0xf]
    %v79 = vld [vmem:[%s0 + $0x80] sm:$0xf]
    %v80 = vld [vmem:[%s0 + $0x84] sm:$0xf]
    %v81 = vld [vmem:[%s0 + $0x88] sm:$0xf]
    %v82 = vld [vmem:[%s0 + $0x8c] sm:$0xf]
    %v83 = vld [vmem:[%s1] sm:$0x1]
    %v85 = vlaneseq
    %v86 = vshrl.u32 %v85, 7
    %v87 = vsub.s32 0, %v86
    %v88 = vrot.slane %v83, %v87
    %v92 = vunpack.c.l.s4 1966171168
    %v93 = vunpack.c.0.s8 %v92
    %v94 = vlaneseq
    %v95 = vshrl.u32 %v94, 7
    %v96 = vsub.s32 %v93, %v95
    %v97 = vrot.slane %v46, %v96
    %v98 = vcombine.high %v97, %v97
    %v100 = vunpack.c.l.s4 1966171168
    %v101 = vunpack.c.0.s8 %v100
    %v102 = vlaneseq
    %v103 = vshrl.u32 %v102, 7
    %v104 = vsub.s32 %v101, %v103
    %v105 = vrot.slane %v97, %v104
    %v107 = vunpack.c.l.s4 1966171168
    %v108 = vunpack.c.0.s8 %v107
    %v109 = vlaneseq
    %v110 = vshrl.u32 %v109, 7
    %v111 = vsub.s32 %v108, %v110
    %v112 = vrot.slane %v98, %v111
    %v113 = vcombine.high %v105, %v105
    %v152 = vunpack.c.l.b16 %v47
    %v153 = vunpack.c.l.b16 %v48
    %v154 = vunpack.c.l.b16 %v49
    %v155 = vunpack.c.l.b16 %v50
    %v156 = vunpack.c.l.b16 %v51
    %v157 = vunpack.c.l.b16 %v52
    %v158 = vunpack.c.l.b16 %v53
    %v159 = vunpack.c.l.b16 %v54
    %v160 = vunpack.c.l.b16 %v55
    %v161 = vunpack.c.l.b16 %v56
    %v162 = vunpack.c.l.b16 %v57
    %v163 = vunpack.c.l.b16 %v58
    %v164 = vunpack.c.l.b16 %v59
    %v165 = vunpack.c.l.b16 %v60
    %v166 = vunpack.c.l.b16 %v61
    %v167 = vunpack.c.l.b16 %v62
    %v168 = vunpack.c.l.b16 %v63
    %v169 = vunpack.c.l.b16 %v64
    %v170 = vunpack.c.l.b16 %v65
    %v171 = vunpack.c.l.b16 %v66
    %v172 = vunpack.c.l.b16 %v67
    %v173 = vunpack.c.l.b16 %v68
    %v174 = vunpack.c.l.b16 %v69
    %v175 = vunpack.c.l.b16 %v70
    %v176 = vunpack.c.l.b16 %v71
    %v177 = vunpack.c.l.b16 %v72
    %v178 = vunpack.c.l.b16 %v73
    %v179 = vunpack.c.l.b16 %v74
    %v180 = vunpack.c.l.b16 %v75
    %v181 = vunpack.c.l.b16 %v76
    %v182 = vunpack.c.l.b16 %v77
    %v183 = vunpack.c.l.b16 %v78
    %v184 = vunpack.c.l.b16 %v79
    %v185 = vunpack.c.l.b16 %v80
    %v186 = vunpack.c.l.b16 %v81
    %v187 = vunpack.c.l.b16 %v82
    %v188 = vpack.c.b16 %v153, %v152
    %v189 = vpack.c.b16 %v155, %v154
    %v190 = vpack.c.b16 %v157, %v156
    %v191 = vpack.c.b16 %v159, %v158
    %v192 = vpack.c.b16 %v161, %v160
    %v193 = vpack.c.b16 %v163, %v162
    %v194 = vpack.c.b16 %v165, %v164
    %v195 = vpack.c.b16 %v167, %v166
    %v196 = vpack.c.b16 %v169, %v168
    %v197 = vpack.c.b16 %v171, %v170
    %v198 = vpack.c.b16 %v173, %v172
    %v199 = vpack.c.b16 %v175, %v174
    %v200 = vpack.c.b16 %v177, %v176
    %v201 = vpack.c.b16 %v179, %v178
    %v202 = vpack.c.b16 %v181, %v180
    %v203 = vpack.c.b16 %v183, %v182
    %v204 = vpack.c.b16 %v185, %v184
    %v205 = vpack.c.b16 %v187, %v186
    %vm224 = vcmask 261120
    %v226 = vsel %vm224, %v113, 0
    %228 = vmatprep.subr.bf16.mxu0 0
    %229 = vmatpush1.bf16.msra.mxu0 %v188
    %230 = vmatprep.subr.bf16.mxu0 0
    %231 = vmatpush1.bf16.msra.mxu0 %v189
    %232 = vmatprep.subr.bf16.mxu0 0
    %233 = vmatpush1.bf16.msra.mxu0 %v190
    %234 = vmatprep.subr.bf16.mxu0 0
    %235 = vmatpush1.bf16.msra.mxu0 %v191
    %236 = vmatprep.subr.bf16.mxu0 0
    %237 = vmatpush1.bf16.msra.mxu0 %v192
    %238 = vmatprep.subr.bf16.mxu0 0
    %239 = vmatpush1.bf16.msra.mxu0 %v193
    %240 = vmatprep.subr.bf16.mxu0 0
    %241 = vmatpush1.bf16.msra.mxu0 %v194
    %242 = vmatprep.subr.bf16.mxu0 0
    %243 = vmatpush1.bf16.msra.mxu0 %v195
    %244 = vmatprep.subr.bf16.mxu0 0
    %245 = vmatpush1.bf16.msra.mxu0 %v196
    %246 = vmatprep.subr.bf16.mxu0 0
    %247 = vmatpush1.bf16.msra.mxu0 %v197
    %248 = vmatprep.subr.bf16.mxu0 0
    %249 = vmatpush1.bf16.msra.mxu0 %v198
    %250 = vmatprep.subr.bf16.mxu0 0
    %251 = vmatpush1.bf16.msra.mxu0 %v199
    %252 = vmatprep.subr.bf16.mxu0 0
    %253 = vmatpush1.bf16.msra.mxu0 %v200
    %254 = vmatprep.subr.bf16.mxu0 0
    %255 = vmatpush1.bf16.msra.mxu0 %v201
    %256 = vmatprep.subr.bf16.mxu0 0
    %257 = vmatpush1.bf16.msra.mxu0 %v202
    %258 = vmatprep.subr.bf16.mxu0 0
    %259 = vmatpush1.bf16.msra.mxu0 %v203
    %260 = vmatprep.mubr.bf16.mxu0 %v112
    %261 = vmatmul.mubr.bf16.gmra.mrb[0].mxu0 %v105
    %v262 = vpop.f32.mrb[0].mxu0
    %v263 = vadd.f32 %v88, %v262
    %v264 = vpop.f32.mrb[0].mxu0
    %v265 = vpop.f32.mrb[0].mxu0
    %v266 = vpop.f32.mrb[0].mxu0
    %267 = vdwg.mxu0
    %268 = vmatprep.subr.bf16.mxu0 0
    %269 = vmatpush1.bf16.msra.mxu0 %v204
    %270 = vmatprep.subr.bf16.mxu0 0
    %271 = vmatpush1.bf16.msra.mxu0 %v205
    %272 = vmatprep.subr.bf16.mxu0 0
    %273 = vmatpush1.bf16.msra.mxu0 0
    %274 = vmatprep.subr.bf16.mxu0 0
    %275 = vmatpush1.bf16.msra.mxu0 0
    %276 = vmatprep.subr.bf16.mxu0 0
    %277 = vmatpush1.bf16.msra.mxu0 0
    %278 = vmatprep.subr.bf16.mxu0 0
    %279 = vmatpush1.bf16.msra.mxu0 0
    %280 = vmatprep.subr.bf16.mxu0 0
    %281 = vmatpush1.bf16.msra.mxu0 0
    %282 = vmatprep.subr.bf16.mxu0 0
    %283 = vmatpush1.bf16.msra.mxu0 0
    %284 = vmatprep.subr.bf16.mxu0 0
    %285 = vmatpush1.bf16.msra.mxu0 0
    %286 = vmatprep.subr.bf16.mxu0 0
    %287 = vmatpush1.bf16.msra.mxu0 0
    %288 = vmatprep.subr.bf16.mxu0 0
    %289 = vmatpush1.bf16.msra.mxu0 0
    %290 = vmatprep.subr.bf16.mxu0 0
    %291 = vmatpush1.bf16.msra.mxu0 0
    %292 = vmatprep.subr.bf16.mxu0 0
    %293 = vmatpush1.bf16.msra.mxu0 0
    %294 = vmatprep.subr.bf16.mxu0 0
    %295 = vmatpush1.bf16.msra.mxu0 0
    %296 = vmatprep.subr.bf16.mxu0 0
    %297 = vmatpush1.bf16.msra.mxu0 0
    %298 = vmatprep.subr.bf16.mxu0 0
    %299 = vmatpush1.bf16.msra.mxu0 0
    %300 = vmatprep.mubr.bf16.mxu0 0
    %301 = vmatmul.mubr.bf16.gmra.mrb[0].mxu0 %v226
    %v302 = vpop.f32.mrb[0].mxu0
    %v303 = vadd.f32 %v263, %v302
    %v304 = vpop.f32.mrb[0].mxu0
    %v305 = vpop.f32.mrb[0].mxu0
    %v306 = vpop.f32.mrb[0].mxu0
    %307 = vdwg.mxu0
    %v308 = vmax.f32 %v303, 0.0
    %v309 = vpack.c.bf16 %v308, %v308
    %vm310 = vcmask 516096
    %311 = vst.msk [vmem:[%s3] sm:$0x1] %vm310, %v309
    // Predicated region
    $region14: #{encoder_backbone_forward.11} parent=1 // pred_check
      _
    $region15: #{encoder_backbone_forward.11} parent=1 // pred_check_branch
      %313 = sbr.rel (0) target = $region17
    $region16: #{encoder_backbone_forward.11} parent=1 // pred_region
      _
    $region17: #{encoder_backbone_forward.11} parent=1 // pred_fallthru
      _
    // Predicated region
    $region18: #{encoder_backbone_forward.11} parent=1 // pred_check
      _
    $region19: #{encoder_backbone_forward.11} parent=1 // pred_check_branch
      %315 = sbr.rel (0) target = $region21
    $region20: #{encoder_backbone_forward.11} parent=1 // pred_region
      _
    $region21: #{encoder_backbone_forward.11} parent=1 // pred_fallthru
      _

// kernel: encoder_backbone_forward.10
$region0: #{encoder_backbone_forward.10}
  #allocation0 [shape = 'u32[]', space=smem, size = 0x4, offset = 0x4, fixed_abs, tag = 'smem constant byte address 0x4 - core index']
  #allocation1 [shape = 'u32[144,128]{1,0:T(1,128)}', space=vmem, size = 0x12000, scoped, tag = 'internal scratch']
  %s0 = inlined_call_operand.vmem [shape: bf16[576,128], index: 0, kind: input, shape index: {}]
  %s1 = inlined_call_operand.vmem [shape: f32[1,128], index: 1, kind: input, shape index: {}]
  %s2 = inlined_call_operand.vmem [shape: bf16[2,1,1,576], index: 2, kind: input, shape index: {}]
  %s3 = inlined_call_operand.vmem [shape: bf16[2,128], index: 3, kind: output, shape index: {}]
  %s4 = sld [smem:[#allocation0]]
  $region22: #{encoder_backbone_forward.10} parent=0
    _
  %s6 = ssub.s32 1, %s4
  %s7 = scalar_select 0, %s6, %s4
  $region1: #{encoder_backbone_forward.10} parent=0
    #allocation2 [shape = 'u8[2560]{0}', space=vmem, size = 0xc00, dematerialized = true, scoped, tag = 'FusionAdapter Buffer %fusion.1 = bf16[2,576]{1,0:T(2,128)(2,1)} fusion(%param_2.1), kind=kLoop, calls=%fused_computation.4.clone, metadata={op_name="jit(encoder_backbone_forward)/reshape" stack_frame_id=12}']
    // Predicated region
    $region2: #{encoder_backbone_forward.10} parent=1 // pred_check
      _
    $region3: #{encoder_backbone_forward.10} parent=1 // pred_check_branch
      %9 = sbr.rel (0) target = $region5
    $region4: #{encoder_backbone_forward.10} parent=1 // pred_region
      _
    $region5: #{encoder_backbone_forward.10} parent=1 // pred_fallthru
      _
    // Predicated region
    $region6: #{encoder_backbone_forward.10} parent=1 // pred_check
      _
    $region7: #{encoder_backbone_forward.10} parent=1 // pred_check_branch
      %11 = sbr.rel (0) target = $region9
    $region8: #{encoder_backbone_forward.10} parent=1 // pred_region
      _
    $region9: #{encoder_backbone_forward.10} parent=1 // pred_fallthru
      _
    // Predicated region
    $region10: #{encoder_backbone_forward.10} parent=1 // pred_check
      _
    $region11: #{encoder_backbone_forward.10} parent=1 // pred_check_branch
      %13 = sbr.rel (0) target = $region13
    $region12: #{encoder_backbone_forward.10} parent=1 // pred_region
      _
    $region13: #{encoder_backbone_forward.10} parent=1 // pred_fallthru
      _
    %s15 = sor.u32 3, 1
    %s16 = sand.u32 %s15, 1
    %v17 = vld [vmem:[%s2] sm:%s16]
    %v18 = vunpack.c.l.bf16 %v17
    %v19 = vunpack.c.h.bf16 %v17
    %v20 = vpack.c.bf16 0.0, %v18
    %22 = vst [vmem:[#allocation2] sm:$0x1] %v20
    %s23 = scalar_lea.vmem %s2, 1
    %s25 = sor.u32 3, 1
    %s26 = sand.u32 %s25, 1
    %v27 = vld [vmem:[%s23] sm:%s26]
    %v28 = vunpack.c.l.bf16 %v27
    %v29 = vunpack.c.h.bf16 %v27
    %s30 = scalar_lea.vmem [#allocation2], 1
    %v31 = vpack.c.bf16 0.0, %v28
    %33 = vst [vmem:[%s30] sm:$0x1] %v31
    %s34 = scalar_lea.vmem %s2, 2
    %s36 = sor.u32 3, 1
    %s37 = sand.u32 %s36, 1
    %v38 = vld [vmem:[%s34] sm:%s37]
    %v39 = vunpack.c.l.bf16 %v38
    %v40 = vunpack.c.h.bf16 %v38
    %s41 = scalar_lea.vmem [#allocation2], 2
    %v42 = vpack.c.bf16 0.0, %v39
    %44 = vst [vmem:[%s41] sm:$0x1] %v42
    %s45 = scalar_lea.vmem %s2, 3
    %s47 = sor.u32 3, 1
    %s48 = sand.u32 %s47, 1
    %v49 = vld [vmem:[%s45] sm:%s48]
    %v50 = vunpack.c.l.bf16 %v49
    %v51 = vunpack.c.h.bf16 %v49
    %s52 = scalar_lea.vmem [#allocation2], 3
    %v53 = vpack.c.bf16 0.0, %v50
    %55 = vst [vmem:[%s52] sm:$0x1] %v53
    %s56 = scalar_lea.vmem %s2, 4
    %s58 = sor.u32 3, 1
    %s59 = sand.u32 %s58, 1
    %v60 = vld [vmem:[%s56] sm:%s59]
    %v61 = vunpack.c.l.bf16 %v60
    %v62 = vunpack.c.h.bf16 %v60
    %s63 = scalar_lea.vmem [#allocation2], 4
    %v64 = vpack.c.bf16 0.0, %v61
    %66 = vst [vmem:[%s63] sm:$0x1] %v64
    %v68 = vld [vmem:[#allocation2] sm:$0x1f]
    %v69 = vld [vmem:[%s0] sm:$0xf]
    %v70 = vld [vmem:[%s0 + $0x4] sm:$0xf]
    %v71 = vld [vmem:[%s0 + $0x8] sm:$0xf]
    %v72 = vld [vmem:[%s0 + $0xc] sm:$0xf]
    %v73 = vld [vmem:[%s0 + $0x10] sm:$0xf]
    %v74 = vld [vmem:[%s0 + $0x14] sm:$0xf]
    %v75 = vld [vmem:[%s0 + $0x18] sm:$0xf]
    %v76 = vld [vmem:[%s0 + $0x1c] sm:$0xf]
    %v77 = vld [vmem:[%s0 + $0x20] sm:$0xf]
    %v78 = vld [vmem:[%s0 + $0x24] sm:$0xf]
    %v79 = vld [vmem:[%s0 + $0x28] sm:$0xf]
    %v80 = vld [vmem:[%s0 + $0x2c] sm:$0xf]
    %v81 = vld [vmem:[%s0 + $0x30] sm:$0xf]
    %v82 = vld [vmem:[%s0 + $0x34] sm:$0xf]
    %v83 = vld [vmem:[%s0 + $0x38] sm:$0xf]
    %v84 = vld [vmem:[%s0 + $0x3c] sm:$0xf]
    %v85 = vld [vmem:[%s0 + $0x40] sm:$0xf]
    %v86 = vld [vmem:[%s0 + $0x44] sm:$0xf]
    %v87 = vld [vmem:[%s0 + $0x48] sm:$0xf]
    %v88 = vld [vmem:[%s0 + $0x4c] sm:$0xf]
    %v89 = vld [vmem:[%s0 + $0x50] sm:$0xf]
    %v90 = vld [vmem:[%s0 + $0x54] sm:$0xf]
    %v91 = vld [vmem:[%s0 + $0x58] sm:$0xf]
    %v92 = vld [vmem:[%s0 + $0x5c] sm:$0xf]
    %v93 = vld [vmem:[%s0 + $0x60] sm:$0xf]
    %v94 = vld [vmem:[%s0 + $0x64] sm:$0xf]
    %v95 = vld [vmem:[%s0 + $0x68] sm:$0xf]
    %v96 = vld [vmem:[%s0 + $0x6c] sm:$0xf]
    %v97 = vld [vmem:[%s0 + $0x70] sm:$0xf]
    %v98 = vld [vmem:[%s0 + $0x74] sm:$0xf]
    %v99 = vld [vmem:[%s0 + $0x78] sm:$0xf]
    %v100 = vld [vmem:[%s0 + $0x7c] sm:$0xf]
    %v101 = vld [vmem:[%s0 + $0x80] sm:$0xf]
    %v102 = vld [vmem:[%s0 + $0x84] sm:$0xf]
    %v103 = vld [vmem:[%s0 + $0x88] sm:$0xf]
    %v104 = vld [vmem:[%s0 + $0x8c] sm:$0xf]
    %v105 = vld [vmem:[%s0 + $0x90] sm:$0xf]
    %v106 = vld [vmem:[%s0 + $0x94] sm:$0xf]
    %v107 = vld [vmem:[%s0 + $0x98] sm:$0xf]
    %v108 = vld [vmem:[%s0 + $0x9c] sm:$0xf]
    %v109 = vld [vmem:[%s0 + $0xa0] sm:$0xf]
    %v110 = vld [vmem:[%s0 + $0xa4] sm:$0xf]
    %v111 = vld [vmem:[%s0 + $0xa8] sm:$0xf]
    %v112 = vld [vmem:[%s0 + $0xac] sm:$0xf]
    %v113 = vld [vmem:[%s0 + $0xb0] sm:$0xf]
    %v114 = vld [vmem:[%s0 + $0xb4] sm:$0xf]
    %v115 = vld [vmem:[%s0 + $0xb8] sm:$0xf]
    %v116 = vld [vmem:[%s0 + $0xbc] sm:$0xf]
    %v117 = vld [vmem:[%s0 + $0xc0] sm:$0xf]
    %v118 = vld [vmem:[%s0 + $0xc4] sm:$0xf]
    %v119 = vld [vmem:[%s0 + $0xc8] sm:$0xf]
    %v120 = vld [vmem:[%s0 + $0xcc] sm:$0xf]
    %v121 = vld [vmem:[%s0 + $0xd0] sm:$0xf]
    %v122 = vld [vmem:[%s0 + $0xd4] sm:$0xf]
    %v123 = vld [vmem:[%s0 + $0xd8] sm:$0xf]
    %v124 = vld [vmem:[%s0 + $0xdc] sm:$0xf]
    %v125 = vld [vmem:[%s0 + $0xe0] sm:$0xf]
    %v126 = vld [vmem:[%s0 + $0xe4] sm:$0xf]
    %v127 = vld [vmem:[%s0 + $0xe8] sm:$0xf]
    %v128 = vld [vmem:[%s0 + $0xec] sm:$0xf]
    %v129 = vld [vmem:[%s0 + $0xf0] sm:$0xf]
    %v130 = vld [vmem:[%s0 + $0xf4] sm:$0xf]
    %v131 = vld [vmem:[%s0 + $0xf8] sm:$0xf]
    %v132 = vld [vmem:[%s0 + $0xfc] sm:$0xf]
    %v133 = vld [vmem:[%s0 + $0x100] sm:$0xf]
    %v134 = vld [vmem:[%s0 + $0x104] sm:$0xf]
    %v135 = vld [vmem:[%s0 + $0x108] sm:$0xf]
    %v136 = vld [vmem:[%s0 + $0x10c] sm:$0xf]
    %v137 = vld [vmem:[%s0 + $0x110] sm:$0xf]
    %v138 = vld [vmem:[%s0 + $0x114] sm:$0xf]
    %v139 = vld [vmem:[%s0 + $0x118] sm:$0xf]
    %v140 = vld [vmem:[%s0 + $0x11c] sm:$0xf]
    %v141 = vld [vmem:[%s1] sm:$0x1]
    %v143 = vlaneseq
    %v144 = vshrl.u32 %v143, 7
    %v145 = vsub.s32 0, %v144
    %v146 = vrot.slane %v141, %v145
    %v149 = vcombine.high %v68, %v68
    %v151 = vunpack.c.l.s4 1966171168
    %v152 = vunpack.c.0.s8 %v151
    %v153 = vlaneseq
    %v154 = vshrl.u32 %v153, 7
    %v155 = vsub.s32 %v152, %v154
    %v156 = vrot.slane %v68, %v155
    %v158 = vunpack.c.l.s4 1966171168
    %v159 = vunpack.c.0.s8 %v158
    %v160 = vlaneseq
    %v161 = vshrl.u32 %v160, 7
    %v162 = vsub.s32 %v159, %v161
    %v163 = vrot.slane %v149, %v162
    %v164 = vcombine.high %v156, %v156
    %v166 = vunpack.c.l.s4 1966171168
    %v167 = vunpack.c.0.s8 %v166
    %v168 = vlaneseq
    %v169 = vshrl.u32 %v168, 7
    %v170 = vsub.s32 %v167, %v169
    %v171 = vrot.slane %v156, %v170
    %v173 = vunpack.c.l.s4 1966171168
    %v174 = vunpack.c.0.s8 %v173
    %v175 = vlaneseq
    %v176 = vshrl.u32 %v175, 7
    %v177 = vsub.s32 %v174, %v176
    %v178 = vrot.slane %v163, %v177
    %v180 = vunpack.c.l.s4 1966171168
    %v181 = vunpack.c.0.s8 %v180
    %v182 = vlaneseq
    %v183 = vshrl.u32 %v182, 7
    %v184 = vsub.s32 %v181, %v183
    %v185 = vrot.slane %v164, %v184
    %v186 = vcombine.high %v171, %v171
    %v187 = vcombine.high %v185, %v185
    %v264 = vunpack.c.l.b16 %v69
    %v265 = vunpack.c.l.b16 %v70
    %v266 = vunpack.c.l.b16 %v71
    %v267 = vunpack.c.l.b16 %v72
    %v268 = vunpack.c.l.b16 %v73
    %v269 = vunpack.c.l.b16 %v74
    %v270 = vunpack.c.l.b16 %v75
    %v271 = vunpack.c.l.b16 %v76
    %v272 = vunpack.c.l.b16 %v77
    %v273 = vunpack.c.l.b16 %v78
    %v274 = vunpack.c.l.b16 %v79
    %v275 = vunpack.c.l.b16 %v80
    %v276 = vunpack.c.l.b16 %v81
    %v277 = vunpack.c.l.b16 %v82
    %v278 = vunpack.c.l.b16 %v83
    %v279 = vunpack.c.l.b16 %v84
    %v280 = vunpack.c.l.b16 %v85
    %v281 = vunpack.c.l.b16 %v86
    %v282 = vunpack.c.l.b16 %v87
    %v283 = vunpack.c.l.b16 %v88
    %v284 = vunpack.c.l.b16 %v89
    %v285 = vunpack.c.l.b16 %v90
    %v286 = vunpack.c.l.b16 %v91
    %v287 = vunpack.c.l.b16 %v92
    %v288 = vunpack.c.l.b16 %v93
    %v289 = vunpack.c.l.b16 %v94
    %v290 = vunpack.c.l.b16 %v95
    %v291 = vunpack.c.l.b16 %v96
    %v292 = vunpack.c.l.b16 %v97
    %v293 = vunpack.c.l.b16 %v98
    %v294 = vunpack.c.l.b16 %v99
    %v295 = vunpack.c.l.b16 %v100
    %v296 = vunpack.c.l.b16 %v101
    %v297 = vunpack.c.l.b16 %v102
    %v298 = vunpack.c.l.b16 %v103
    %v299 = vunpack.c.l.b16 %v104
    %v300 = vunpack.c.l.b16 %v105
    %v301 = vunpack.c.l.b16 %v106
    %v302 = vunpack.c.l.b16 %v107
    %v303 = vunpack.c.l.b16 %v108
    %v304 = vunpack.c.l.b16 %v109
    %v305 = vunpack.c.l.b16 %v110
    %v306 = vunpack.c.l.b16 %v111
    %v307 = vunpack.c.l.b16 %v112
    %v308 = vunpack.c.l.b16 %v113
    %v309 = vunpack.c.l.b16 %v114
    %v310 = vunpack.c.l.b16 %v115
    %v311 = vunpack.c.l.b16 %v116
    %v312 = vunpack.c.l.b16 %v117
    %v313 = vunpack.c.l.b16 %v118
    %v314 = vunpack.c.l.b16 %v119
    %v315 = vunpack.c.l.b16 %v120
    %v316 = vunpack.c.l.b16 %v121
    %v317 = vunpack.c.l.b16 %v122
    %v318 = vunpack.c.l.b16 %v123
    %v319 = vunpack.c.l.b16 %v124
    %v320 = vunpack.c.l.b16 %v125
    %v321 = vunpack.c.l.b16 %v126
    %v322 = vunpack.c.l.b16 %v127
    %v323 = vunpack.c.l.b16 %v128
    %v324 = vunpack.c.l.b16 %v129
    %v325 = vunpack.c.l.b16 %v130
    %v326 = vunpack.c.l.b16 %v131
    %v327 = vunpack.c.l.b16 %v132
    %v328 = vunpack.c.l.b16 %v133
    %v329 = vunpack.c.l.b16 %v134
    %v330 = vunpack.c.l.b16 %v135
    %v331 = vunpack.c.l.b16 %v136
    %v332 = vunpack.c.l.b16 %v137
    %v333 = vunpack.c.l.b16 %v138
    %v334 = vunpack.c.l.b16 %v139
    %v335 = vunpack.c.l.b16 %v140
    %v336 = vpack.c.b16 %v265, %v264
    %v337 = vpack.c.b16 %v267, %v266
    %v338 = vpack.c.b16 %v269, %v268
    %v339 = vpack.c.b16 %v271, %v270
    %v340 = vpack.c.b16 %v273, %v272
    %v341 = vpack.c.b16 %v275, %v274
    %v342 = vpack.c.b16 %v277, %v276
    %v343 = vpack.c.b16 %v279, %v278
    %v344 = vpack.c.b16 %v281, %v280
    %v345 = vpack.c.b16 %v283, %v282
    %v346 = vpack.c.b16 %v285, %v284
    %v347 = vpack.c.b16 %v287, %v286
    %v348 = vpack.c.b16 %v289, %v288
    %v349 = vpack.c.b16 %v291, %v290
    %v350 = vpack.c.b16 %v293, %v292
    %v351 = vpack.c.b16 %v295, %v294
    %v352 = vpack.c.b16 %v297, %v296
    %v353 = vpack.c.b16 %v299, %v298
    %v354 = vpack.c.b16 %v301, %v300
    %v355 = vpack.c.b16 %v303, %v302
    %v356 = vpack.c.b16 %v305, %v304
    %v357 = vpack.c.b16 %v307, %v306
    %v358 = vpack.c.b16 %v309, %v308
    %v359 = vpack.c.b16 %v311, %v310
    %v360 = vpack.c.b16 %v313, %v312
    %v361 = vpack.c.b16 %v315, %v314
    %v362 = vpack.c.b16 %v317, %v316
    %v363 = vpack.c.b16 %v319, %v318
    %v364 = vpack.c.b16 %v321, %v320
    %v365 = vpack.c.b16 %v323, %v322
    %v366 = vpack.c.b16 %v325, %v324
    %v367 = vpack.c.b16 %v327, %v326
    %v368 = vpack.c.b16 %v329, %v328
    %v369 = vpack.c.b16 %v331, %v330
    %v370 = vpack.c.b16 %v333, %v332
    %v371 = vpack.c.b16 %v335, %v334
    %vm408 = vcmask 523264
    %v410 = vsel %vm408, %v178, 0
    %412 = vmatprep.subr.bf16.mxu0 0
    %413 = vmatpush1.bf16.msra.mxu0 %v336
    %414 = vmatprep.subr.bf16.mxu0 0
    %415 = vmatpush1.bf16.msra.mxu0 %v337
    %416 = vmatprep.subr.bf16.mxu0 0
    %417 = vmatpush1.bf16.msra.mxu0 %v338
    %418 = vmatprep.subr.bf16.mxu0 0
    %419 = vmatpush1.bf16.msra.mxu0 %v339
    %420 = vmatprep.subr.bf16.mxu0 0
    %421 = vmatpush1.bf16.msra.mxu0 %v340
    %422 = vmatprep.subr.bf16.mxu0 0
    %423 = vmatpush1.bf16.msra.mxu0 %v341
    %424 = vmatprep.subr.bf16.mxu0 0
    %425 = vmatpush1.bf16.msra.mxu0 %v342
    %426 = vmatprep.subr.bf16.mxu0 0
    %427 = vmatpush1.bf16.msra.mxu0 %v343
    %428 = vmatprep.subr.bf16.mxu0 0
    %429 = vmatpush1.bf16.msra.mxu0 %v344
    %430 = vmatprep.subr.bf16.mxu0 0
    %431 = vmatpush1.bf16.msra.mxu0 %v345
    %432 = vmatprep.subr.bf16.mxu0 0
    %433 = vmatpush1.bf16.msra.mxu0 %v346
    %434 = vmatprep.subr.bf16.mxu0 0
    %435 = vmatpush1.bf16.msra.mxu0 %v347
    %436 = vmatprep.subr.bf16.mxu0 0
    %437 = vmatpush1.bf16.msra.mxu0 %v348
    %438 = vmatprep.subr.bf16.mxu0 0
    %439 = vmatpush1.bf16.msra.mxu0 %v349
    %440 = vmatprep.subr.bf16.mxu0 0
    %441 = vmatpush1.bf16.msra.mxu0 %v350
    %442 = vmatprep.subr.bf16.mxu0 0
    %443 = vmatpush1.bf16.msra.mxu0 %v351
    %444 = vmatprep.mubr.bf16.mxu0 %v185
    %445 = vmatmul.mubr.bf16.gmra.mrb[0].mxu0 %v171
    %v446 = vpop.f32.mrb[0].mxu0
    %v447 = vadd.f32 %v146, %v446
    %v448 = vpop.f32.mrb[0].mxu0
    %v449 = vpop.f32.mrb[0].mxu0
    %v450 = vpop.f32.mrb[0].mxu0
    %451 = vdwg.mxu0
    %452 = vmatprep.subr.bf16.mxu0 0
    %453 = vmatpush1.bf16.msra.mxu0 %v352
    %454 = vmatprep.subr.bf16.mxu0 0
    %455 = vmatpush1.bf16.msra.mxu0 %v353
    %456 = vmatprep.subr.bf16.mxu0 0
    %457 = vmatpush1.bf16.msra.mxu0 %v354
    %458 = vmatprep.subr.bf16.mxu0 0
    %459 = vmatpush1.bf16.msra.mxu0 %v355
    %460 = vmatprep.subr.bf16.mxu0 0
    %461 = vmatpush1.bf16.msra.mxu0 %v356
    %462 = vmatprep.subr.bf16.mxu0 0
    %463 = vmatpush1.bf16.msra.mxu0 %v357
    %464 = vmatprep.subr.bf16.mxu0 0
    %465 = vmatpush1.bf16.msra.mxu0 %v358
    %466 = vmatprep.subr.bf16.mxu0 0
    %467 = vmatpush1.bf16.msra.mxu0 %v359
    %468 = vmatprep.subr.bf16.mxu0 0
    %469 = vmatpush1.bf16.msra.mxu0 %v360
    %470 = vmatprep.subr.bf16.mxu0 0
    %471 = vmatpush1.bf16.msra.mxu0 %v361
    %472 = vmatprep.subr.bf16.mxu0 0
    %473 = vmatpush1.bf16.msra.mxu0 %v362
    %474 = vmatprep.subr.bf16.mxu0 0
    %475 = vmatpush1.bf16.msra.mxu0 %v363
    %476 = vmatprep.subr.bf16.mxu0 0
    %477 = vmatpush1.bf16.msra.mxu0 %v364
    %478 = vmatprep.subr.bf16.mxu0 0
    %479 = vmatpush1.bf16.msra.mxu0 %v365
    %480 = vmatprep.subr.bf16.mxu0 0
    %481 = vmatpush1.bf16.msra.mxu0 %v366
    %482 = vmatprep.subr.bf16.mxu0 0
    %483 = vmatpush1.bf16.msra.mxu0 %v367
    %484 = vmatprep.mubr.bf16.mxu0 %v187
    %485 = vmatmul.mubr.bf16.gmra.mrb[0].mxu0 %v186
    %v486 = vpop.f32.mrb[0].mxu0
    %v487 = vadd.f32 %v447, %v486
    %v488 = vpop.f32.mrb[0].mxu0
    %v489 = vpop.f32.mrb[0].mxu0
    %v490 = vpop.f32.mrb[0].mxu0
    %491 = vdwg.mxu0
    %492 = vmatprep.subr.bf16.mxu0 0
    %493 = vmatpush1.bf16.msra.mxu0 %v368
    %494 = vmatprep.subr.bf16.mxu0 0
    %495 = vmatpush1.bf16.msra.mxu0 %v369
    %496 = vmatprep.subr.bf16.mxu0 0
    %497 = vmatpush1.bf16.msra.mxu0 %v370
    %498 = vmatprep.subr.bf16.mxu0 0
    %499 = vmatpush1.bf16.msra.mxu0 %v371
    %500 = vmatprep.subr.bf16.mxu0 0
    %501 = vmatpush1.bf16.msra.mxu0 0
    %502 = vmatprep.subr.bf16.mxu0 0
    %503 = vmatpush1.bf16.msra.mxu0 0
    %504 = vmatprep.subr.bf16.mxu0 0
    %505 = vmatpush1.bf16.msra.mxu0 0
    %506 = vmatprep.subr.bf16.mxu0 0
    %507 = vmatpush1.bf16.msra.mxu0 0
    %508 = vmatprep.subr.bf16.mxu0 0
    %509 = vmatpush1.bf16.msra.mxu0 0
    %510 = vmatprep.subr.bf16.mxu0 0
    %511 = vmatpush1.bf16.msra.mxu0 0
    %512 = vmatprep.subr.bf16.mxu0 0
    %513 = vmatpush1.bf16.msra.mxu0 0
    %514 = vmatprep.subr.bf16.mxu0 0
    %515 = vmatpush1.bf16.msra.mxu0 0
    %516 = vmatprep.subr.bf16.mxu0 0
    %517 = vmatpush1.bf16.msra.mxu0 0
    %518 = vmatprep.subr.bf16.mxu0 0
    %519 = vmatpush1.bf16.msra.mxu0 0
    %520 = vmatprep.subr.bf16.mxu0 0
    %521 = vmatpush1.bf16.msra.mxu0 0
    %522 = vmatprep.subr.bf16.mxu0 0
    %523 = vmatpush1.bf16.msra.mxu0 0
    %524 = vmatprep.mubr.bf16.mxu0 0
    %525 = vmatmul.mubr.bf16.gmra.mrb[0].mxu0 %v410
    %v526 = vpop.f32.mrb[0].mxu0
    %v527 = vadd.f32 %v487, %v526
    %v528 = vpop.f32.mrb[0].mxu0
    %v529 = vpop.f32.mrb[0].mxu0
    %v530 = vpop.f32.mrb[0].mxu0
    %531 = vdwg.mxu0
    %v532 = vmax.f32 %v527, 0.0
    %v533 = vpack.c.bf16 %v532, %v532
    %534 = vst [vmem:[%s3] sm:$0x1] %v533
    // Predicated region
    $region14: #{encoder_backbone_forward.10} parent=1 // pred_check
      _
    $region15: #{encoder_backbone_forward.10} parent=1 // pred_check_branch
      %536 = sbr.rel (0) target = $region17
    $region16: #{encoder_backbone_forward.10} parent=1 // pred_region
      _
    $region17: #{encoder_backbone_forward.10} parent=1 // pred_fallthru
      _
    // Predicated region
    $region18: #{encoder_backbone_forward.10} parent=1 // pred_check
      _
    $region19: #{encoder_backbone_forward.10} parent=1 // pred_check_branch
      %538 = sbr.rel (0) target = $region21
    $region20: #{encoder_backbone_forward.10} parent=1 // pred_region
      _
    $region21: #{encoder_backbone_forward.10} parent=1 // pred_fallthru
      _

</llo_original>
